<compile_context>
chip_gen: v7x
topology: tpu7x:2x2x1
jax: 0.10.0
libtpu: 0.0.40
codegen_flags: <defaults>
</compile_context>

<pallas_src>
import jax
import jax.numpy as jnp
from jax import lax
from jax.experimental import pallas as pl
from jax.experimental.pallas import tpu as pltpu

# ---- small, forward-consistent sizes ----
CORPUS_SIZE = 50
EMBED_DIM = 32
HIDDEN_DIM = 32
N_LAYERS = 2
OUTPUT_SIZE = 5
BATCH = 2
SEQ_LEN = 8

B_PAD = 8        # pad batch to a full sublane tile (8)
LANE = 128       # pad the fc output to a full lane tile (unmasked store)


def lstm_fc_kernel(xproj_ref, whh0_ref, wih1_ref, whh1_ref, b1_ref,
                   wfc_ref, bfc_ref, h0_ref, c0_ref,
                   out_ref, hn_ref, cn_ref):
    """2-layer LSTM over the full sequence (all weights/activations VMEM-resident),
    then Linear + Sigmoid on the last top-layer hidden state.

    xproj_ref: (T, B_PAD, 4H) f32 = embedding[ids] @ W_ih_l0^T + (b_ih_l0 + b_hh_l0),
               precomputed in the wrapper (one aligned load per step; nothing
               data-dependent remains on the layer-0 input path).
    whh0_ref : (H, 4H) f32
    wih1_ref : (H, 4H) f32 = W_ih_l1^T
    whh1_ref : (H, 4H) f32 = W_hh_l1^T
    b1_ref   : (1, 4H) f32 = b_ih_l1 + b_hh_l1
    wfc_ref  : (H, LANE) f32 zero-padded past OUTPUT_SIZE; bfc_ref: (1, LANE)
    h0/c0    : (2, B_PAD, H) initial hidden/cell
    out_ref  : (B_PAD, LANE); hn_ref/cn_ref: (2, B_PAD, H)
    """
    T, Bp, _ = xproj_ref.shape
    H = whh0_ref.shape[0]

    # Hoist loop-invariant loads / broadcasts once (fori_loop is fully unrolled, so
    # anything inside `step` is replicated T times).
    whh0 = whh0_ref[...]                                   # (H, 4H)
    wih1 = wih1_ref[...]                                   # (H, 4H)
    whh1 = whh1_ref[...]                                   # (H, 4H)
    b1 = jnp.broadcast_to(b1_ref[...], (Bp, 4 * H))        # (B_PAD, 4H)

    def gates_to_hc(gates, c_prev):
        # 2 full-vreg EUP launches (sigmoid + tanh on the whole (Bp, 4H) gate vector).
        sig = jax.nn.sigmoid(gates)
        tnh = jnp.tanh(gates)
        i = sig[:, 0 * H:1 * H]
        f = sig[:, 1 * H:2 * H]
        g = tnh[:, 2 * H:3 * H]
        o = sig[:, 3 * H:4 * H]
        c_new = f * c_prev + i * g
        h_new = o * jnp.tanh(c_new)
        return h_new, c_new

    def step(t, carry):
        h0, c0, h1, c1 = carry
        # Layer-1 h-side MXU push first: it depends only on previous-step state, so
        # its matmul latency hides under layer-0's cell math below.
        g1_h = jnp.dot(h1, whh1, preferred_element_type=jnp.float32)
        # Layer 0: input projection (incl. both biases) precomputed in the wrapper;
        # only h_prev @ W_hh0 remains on the per-step layer-0 critical path.
        g0 = xproj_ref[t] + jnp.dot(h0, whh0, preferred_element_type=jnp.float32)
        h0n, c0n = gates_to_hc(g0, c0)
        # Inter-layer dropout (p=0.5) is identity in eval mode.
        # Layer 1, x-side push; the two K=32 pushes accumulate in the MXU result path.
        g1 = g1_h + jnp.dot(h0n, wih1, preferred_element_type=jnp.float32) + b1
        h1n, c1n = gates_to_hc(g1, c1)
        return (h0n, c0n, h1n, c1n)

    carry0 = (h0_ref[0], c0_ref[0], h0_ref[1], c0_ref[1])
    # T is small here; for long sequences switch to a bounded unroll factor (4-8).
    h0f, c0f, h1f, c1f = lax.fori_loop(0, T, step, carry0, unroll=True)

    # Write the running state back once, after the loop.
    hn_ref[0] = h0f
    hn_ref[1] = h1f
    cn_ref[0] = c0f
    cn_ref[1] = c1f

    # dropout(0.3) is identity in eval mode; fc + sigmoid on the last timestep's
    # top-layer hidden state == out.view(B, -1)[:, -5:] (requires OUTPUT_SIZE == 5).
    logits = (jnp.dot(h1f, wfc_ref[...], preferred_element_type=jnp.float32)
              + bfc_ref[...])
    out_ref[...] = jax.nn.sigmoid(logits)                  # lane-dense (8, 128) store


def init_params(key, corpus_size, embed_dim, hidden_dim, output_size):
    """Deterministic init mimicking PyTorch defaults (uniform(-1/sqrt(H), 1/sqrt(H)))."""
    ks = jax.random.split(key, 16)
    s = 1.0 / jnp.sqrt(hidden_dim)
    H4 = 4 * hidden_dim
    u = lambda k, shape, lim: jax.random.uniform(k, shape, jnp.float32, -lim, lim)
    params = {
        "embedding": jax.random.normal(ks[0], (corpus_size, embed_dim), jnp.float32),
        # LSTM layer 0
        "w_ih_l0": u(ks[1], (H4, embed_dim), s),
        "w_hh_l0": u(ks[2], (H4, hidden_dim), s),
        "b_ih_l0": u(ks[3], (H4,), s),
        "b_hh_l0": u(ks[4], (H4,), s),
        # LSTM layer 1
        "w_ih_l1": u(ks[5], (H4, hidden_dim), s),
        "w_hh_l1": u(ks[6], (H4, hidden_dim), s),
        "b_ih_l1": u(ks[7], (H4,), s),
        "b_hh_l1": u(ks[8], (H4,), s),
        # fc
        "w_fc": u(ks[9], (output_size, hidden_dim), 1.0 / jnp.sqrt(hidden_dim)),
        "b_fc": u(ks[10], (output_size,), 1.0 / jnp.sqrt(hidden_dim)),
    }
    return params


@jax.jit
def sentiment_rnn_forward(x, h0, c0, params):
    B, T = x.shape
    H = h0.shape[-1]
    O = params["w_fc"].shape[0]

    # Fold embedding lookup + layer-0 input projection + both layer-0 biases into a
    # single (V, 4H) table (gather and matmul commute by linearity), then gather it
    # OUTSIDE the kernel into a (T, B_PAD, 4H) slab.  The table itself never enters
    # VMEM, so the kernel's footprint is vocab-size independent.
    proj_table = (params["embedding"] @ params["w_ih_l0"].T
                  + params["b_ih_l0"] + params["b_hh_l0"])             # (V, 4H)
    ids = jnp.zeros((B_PAD, T), jnp.int32).at[:B].set(x)
    xproj = jnp.transpose(proj_table[ids], (1, 0, 2))                   # (T, B_PAD, 4H)

    whh0 = params["w_hh_l0"].T                                          # (H, 4H)
    wih1 = params["w_ih_l1"].T                                          # (H, 4H)
    whh1 = params["w_hh_l1"].T                                          # (H, 4H)
    b1 = (params["b_ih_l1"] + params["b_hh_l1"])[None, :]               # (1, 4H)
    # Lane-dense fc weights (zero-padded to 128 output lanes).
    wfc = jnp.zeros((H, LANE), jnp.float32).at[:, :O].set(params["w_fc"].T)
    bfc = jnp.zeros((1, LANE), jnp.float32).at[:, :O].set(params["b_fc"])

    # Pad batch to 8 sublanes (padded rows use token 0's projection and zero state;
    # their results are sliced away below and never feed real rows).
    h0p = jnp.zeros((N_LAYERS, B_PAD, H), jnp.float32).at[:, :B].set(h0)
    c0p = jnp.zeros((N_LAYERS, B_PAD, H), jnp.float32).at[:, :B].set(c0)

    vmem = pl.BlockSpec(memory_space=pltpu.MemorySpace.VMEM)
    out, hn, cn = pl.pallas_call(
        lstm_fc_kernel,
        out_shape=(
            jax.ShapeDtypeStruct((B_PAD, LANE), jnp.float32),
            jax.ShapeDtypeStruct((N_LAYERS, B_PAD, H), jnp.float32),
            jax.ShapeDtypeStruct((N_LAYERS, B_PAD, H), jnp.float32),
        ),
        in_specs=[vmem] * 9,
        out_specs=(vmem, vmem, vmem),
    )(xproj, whh0, wih1, whh1, b1, wfc, bfc, h0p, c0p)
    return out[:B, :O], (hn[:, :B], cn[:, :B])


def reference_forward(x, h0, c0, params):
    """Pure-JAX reference mirroring the PyTorch module (eval mode)."""
    embeds = params["embedding"][x]  # (B, T, E)
    H = HIDDEN_DIM

    def lstm_cell(x_t, h, c, w_ih, w_hh, b_ih, b_hh):
        gates = x_t @ w_ih.T + b_ih + h @ w_hh.T + b_hh
        i, f, g, o = jnp.split(gates, 4, axis=-1)
        c_new = jax.nn.sigmoid(f) * c + jax.nn.sigmoid(i) * jnp.tanh(g)
        h_new = jax.nn.sigmoid(o) * jnp.tanh(c_new)
        return h_new, c_new

    def step(carry, x_t):
        (h0_, c0_, h1_, c1_) = carry
        h0n, c0n = lstm_cell(x_t, h0_, c0_, params["w_ih_l0"], params["w_hh_l0"],
                             params["b_ih_l0"], params["b_hh_l0"])
        h1n, c1n = lstm_cell(h0n, h1_, c1_, params["w_ih_l1"], params["w_hh_l1"],
                             params["b_ih_l1"], params["b_hh_l1"])
        return (h0n, c0n, h1n, c1n), h1n

    carry0 = (h0[0], c0[0], h0[1], c0[1])
    (h0f, c0f, h1f, c1f), lstm_out = lax.scan(step, carry0, jnp.transpose(embeds, (1, 0, 2)))
    lstm_out = jnp.transpose(lstm_out, (1, 0, 2))  # (B, T, H)
    flat = lstm_out.reshape(-1, H)
    out = jax.nn.sigmoid(flat @ params["w_fc"].T + params["b_fc"])
    out = out.reshape(x.shape[0], -1)[:, -5:]
    hn = jnp.stack([h0f, h1f], axis=0)
    cn = jnp.stack([c0f, c1f], axis=0)
    return out, (hn, cn)


if __name__ == "__main__":
    # out.view(B, -1)[:, -5:] == sigmoid(fc(h_T)) only because OUTPUT_SIZE == 5.
    assert OUTPUT_SIZE == 5

    key = jax.random.PRNGKey(0)
    k_x, _ = jax.random.split(key)

    x = jax.random.randint(k_x, (BATCH, SEQ_LEN), 0, CORPUS_SIZE, dtype=jnp.int32)
    params = init_params(jax.random.PRNGKey(42), CORPUS_SIZE, EMBED_DIM, HIDDEN_DIM, OUTPUT_SIZE)

    # init_hidden(batch_size): zeros of (n_layers, B, H)
    h0 = jnp.zeros((N_LAYERS, BATCH, HIDDEN_DIM), jnp.float32)
    c0 = jnp.zeros((N_LAYERS, BATCH, HIDDEN_DIM), jnp.float32)

    out, (hn, cn) = sentiment_rnn_forward(x, h0, c0, params)
    jax.block_until_ready((out, hn, cn))

    ref_out, (ref_hn, ref_cn) = reference_forward(x, h0, c0, params)
    assert out.shape == (BATCH, OUTPUT_SIZE)
    assert hn.shape == (N_LAYERS, BATCH, HIDDEN_DIM)
    assert cn.shape == (N_LAYERS, BATCH, HIDDEN_DIM)
    assert jnp.allclose(out, ref_out, atol=5e-5, rtol=5e-5)
    assert jnp.allclose(hn, ref_hn, atol=5e-5, rtol=5e-5)
    assert jnp.allclose(cn, ref_cn, atol=5e-5, rtol=5e-5)

    print("KERNEL_OK")
</pallas_src>

<mosaic_0001>
module attributes {stable_mosaic.version = 11 : i64} {
  func.func @lstm_fc_kernel(%arg0: memref<8x8x128xf32, #tpu.memory_space<vmem>>, %arg1: memref<32x128xf32, #tpu.memory_space<vmem>>, %arg2: memref<32x128xf32, #tpu.memory_space<vmem>>, %arg3: memref<32x128xf32, #tpu.memory_space<vmem>>, %arg4: memref<1x128xf32, #tpu.memory_space<vmem>>, %arg5: memref<32x128xf32, #tpu.memory_space<vmem>>, %arg6: memref<1x128xf32, #tpu.memory_space<vmem>>, %arg7: memref<2x8x32xf32, #tpu.memory_space<vmem>>, %arg8: memref<2x8x32xf32, #tpu.memory_space<vmem>>, %arg9: memref<8x128xf32, #tpu.memory_space<vmem>>, %arg10: memref<2x8x32xf32, #tpu.memory_space<vmem>>, %arg11: memref<2x8x32xf32, #tpu.memory_space<vmem>>) attributes {dimension_semantics = [], scalar_prefetch = 0 : i64, scratch_operands = 0 : i64, tpu.core_type = #tpu.core_type<tc>} {
    %c0 = arith.constant 0 : index
    %c0_0 = arith.constant 0 : index
    %0 = vector.load %arg1[%c0, %c0_0] : memref<32x128xf32, #tpu.memory_space<vmem>>, vector<32x128xf32>
    %c0_1 = arith.constant 0 : index
    %c0_2 = arith.constant 0 : index
    %1 = vector.load %arg2[%c0_1, %c0_2] : memref<32x128xf32, #tpu.memory_space<vmem>>, vector<32x128xf32>
    %c0_3 = arith.constant 0 : index
    %c0_4 = arith.constant 0 : index
    %2 = vector.load %arg3[%c0_3, %c0_4] : memref<32x128xf32, #tpu.memory_space<vmem>>, vector<32x128xf32>
    %c0_5 = arith.constant 0 : index
    %c0_6 = arith.constant 0 : index
    %3 = vector.load %arg4[%c0_5, %c0_6] : memref<1x128xf32, #tpu.memory_space<vmem>>, vector<1x128xf32>
    %4 = vector.shape_cast %3 : vector<1x128xf32> to vector<1x128xf32>
    %5 = vector.broadcast %4 : vector<1x128xf32> to vector<8x128xf32>
    %c0_7 = arith.constant 0 : index
    %c0_8 = arith.constant 0 : index
    %c0_9 = arith.constant 0 : index
    %6 = vector.load %arg7[%c0_7, %c0_8, %c0_9] : memref<2x8x32xf32, #tpu.memory_space<vmem>>, vector<1x8x32xf32>
    %7 = vector.shape_cast %6 : vector<1x8x32xf32> to vector<8x32xf32>
    %c0_10 = arith.constant 0 : index
    %c0_11 = arith.constant 0 : index
    %c0_12 = arith.constant 0 : index
    %8 = vector.load %arg8[%c0_10, %c0_11, %c0_12] : memref<2x8x32xf32, #tpu.memory_space<vmem>>, vector<1x8x32xf32>
    %9 = vector.shape_cast %8 : vector<1x8x32xf32> to vector<8x32xf32>
    %c1 = arith.constant 1 : index
    %c0_13 = arith.constant 0 : index
    %c0_14 = arith.constant 0 : index
    %10 = vector.load %arg7[%c1, %c0_13, %c0_14] : memref<2x8x32xf32, #tpu.memory_space<vmem>>, vector<1x8x32xf32>
    %11 = vector.shape_cast %10 : vector<1x8x32xf32> to vector<8x32xf32>
    %c1_15 = arith.constant 1 : index
    %c0_16 = arith.constant 0 : index
    %c0_17 = arith.constant 0 : index
    %12 = vector.load %arg8[%c1_15, %c0_16, %c0_17] : memref<2x8x32xf32, #tpu.memory_space<vmem>>, vector<1x8x32xf32>
    %13 = vector.shape_cast %12 : vector<1x8x32xf32> to vector<8x32xf32>
    %c0_i32 = arith.constant 0 : i32
    %cst = arith.constant dense<0.000000e+00> : vector<8x128xf32>
    %14 = tpu.matmul %11, %2, %cst {dimension_numbers = #tpu.dot_dimension_numbers<[1], [0], [0], [1], [0, 0, 1, 1], [], []>} : vector<8x32xf32>, vector<32x128xf32>, vector<8x128xf32> -> vector<8x128xf32>
    %15 = arith.index_cast %c0_i32 : i32 to index
    %c0_18 = arith.constant 0 : index
    %c0_19 = arith.constant 0 : index
    %16 = vector.load %arg0[%15, %c0_18, %c0_19] : memref<8x8x128xf32, #tpu.memory_space<vmem>>, vector<1x8x128xf32>
    %17 = vector.shape_cast %16 : vector<1x8x128xf32> to vector<8x128xf32>
    %cst_20 = arith.constant dense<0.000000e+00> : vector<8x128xf32>
    %18 = tpu.matmul %7, %0, %cst_20 {dimension_numbers = #tpu.dot_dimension_numbers<[1], [0], [0], [1], [0, 0, 1, 1], [], []>} : vector<8x32xf32>, vector<32x128xf32>, vector<8x128xf32> -> vector<8x128xf32>
    %19 = arith.addf %17, %18 : vector<8x128xf32>
    %20 = arith.negf %19 : vector<8x128xf32>
    %21 = math.exp %20 : vector<8x128xf32>
    %cst_21 = arith.constant 1.000000e+00 : f32
    %22 = vector.broadcast %cst_21 : f32 to vector<8x128xf32>
    %23 = arith.addf %22, %21 : vector<8x128xf32>
    %24 = arith.divf %22, %23 : vector<8x128xf32>
    %25 = math.tanh %19 : vector<8x128xf32>
    %26 = vector.extract_strided_slice %24 {offsets = [0, 0], sizes = [8, 32], strides = [1, 1]} : vector<8x128xf32> to vector<8x32xf32>
    %27 = vector.extract_strided_slice %24 {offsets = [0, 32], sizes = [8, 32], strides = [1, 1]} : vector<8x128xf32> to vector<8x32xf32>
    %28 = vector.extract_strided_slice %25 {offsets = [0, 64], sizes = [8, 32], strides = [1, 1]} : vector<8x128xf32> to vector<8x32xf32>
    %29 = vector.extract_strided_slice %24 {offsets = [0, 96], sizes = [8, 32], strides = [1, 1]} : vector<8x128xf32> to vector<8x32xf32>
    %30 = arith.mulf %27, %9 : vector<8x32xf32>
    %31 = arith.mulf %26, %28 : vector<8x32xf32>
    %32 = arith.addf %30, %31 : vector<8x32xf32>
    %33 = math.tanh %32 : vector<8x32xf32>
    %34 = arith.mulf %29, %33 : vector<8x32xf32>
    %cst_22 = arith.constant dense<0.000000e+00> : vector<8x128xf32>
    %35 = tpu.matmul %34, %1, %cst_22 {dimension_numbers = #tpu.dot_dimension_numbers<[1], [0], [0], [1], [0, 0, 1, 1], [], []>} : vector<8x32xf32>, vector<32x128xf32>, vector<8x128xf32> -> vector<8x128xf32>
    %36 = arith.addf %14, %35 : vector<8x128xf32>
    %37 = arith.addf %36, %5 : vector<8x128xf32>
    %38 = arith.negf %37 : vector<8x128xf32>
    %39 = math.exp %38 : vector<8x128xf32>
    %cst_23 = arith.constant 1.000000e+00 : f32
    %40 = vector.broadcast %cst_23 : f32 to vector<8x128xf32>
    %41 = arith.addf %40, %39 : vector<8x128xf32>
    %42 = arith.divf %40, %41 : vector<8x128xf32>
    %43 = math.tanh %37 : vector<8x128xf32>
    %44 = vector.extract_strided_slice %42 {offsets = [0, 0], sizes = [8, 32], strides = [1, 1]} : vector<8x128xf32> to vector<8x32xf32>
    %45 = vector.extract_strided_slice %42 {offsets = [0, 32], sizes = [8, 32], strides = [1, 1]} : vector<8x128xf32> to vector<8x32xf32>
    %46 = vector.extract_strided_slice %43 {offsets = [0, 64], sizes = [8, 32], strides = [1, 1]} : vector<8x128xf32> to vector<8x32xf32>
    %47 = vector.extract_strided_slice %42 {offsets = [0, 96], sizes = [8, 32], strides = [1, 1]} : vector<8x128xf32> to vector<8x32xf32>
    %48 = arith.mulf %45, %13 : vector<8x32xf32>
    %49 = arith.mulf %44, %46 : vector<8x32xf32>
    %50 = arith.addf %48, %49 : vector<8x32xf32>
    %51 = math.tanh %50 : vector<8x32xf32>
    %52 = arith.mulf %47, %51 : vector<8x32xf32>
    %c1_i32 = arith.constant 1 : i32
    %cst_24 = arith.constant dense<0.000000e+00> : vector<8x128xf32>
    %53 = tpu.matmul %52, %2, %cst_24 {dimension_numbers = #tpu.dot_dimension_numbers<[1], [0], [0], [1], [0, 0, 1, 1], [], []>} : vector<8x32xf32>, vector<32x128xf32>, vector<8x128xf32> -> vector<8x128xf32>
    %54 = arith.index_cast %c1_i32 : i32 to index
    %c0_25 = arith.constant 0 : index
    %c0_26 = arith.constant 0 : index
    %55 = vector.load %arg0[%54, %c0_25, %c0_26] : memref<8x8x128xf32, #tpu.memory_space<vmem>>, vector<1x8x128xf32>
    %56 = vector.shape_cast %55 : vector<1x8x128xf32> to vector<8x128xf32>
    %cst_27 = arith.constant dense<0.000000e+00> : vector<8x128xf32>
    %57 = tpu.matmul %34, %0, %cst_27 {dimension_numbers = #tpu.dot_dimension_numbers<[1], [0], [0], [1], [0, 0, 1, 1], [], []>} : vector<8x32xf32>, vector<32x128xf32>, vector<8x128xf32> -> vector<8x128xf32>
    %58 = arith.addf %56, %57 : vector<8x128xf32>
    %59 = arith.negf %58 : vector<8x128xf32>
    %60 = math.exp %59 : vector<8x128xf32>
    %cst_28 = arith.constant 1.000000e+00 : f32
    %61 = vector.broadcast %cst_28 : f32 to vector<8x128xf32>
    %62 = arith.addf %61, %60 : vector<8x128xf32>
    %63 = arith.divf %61, %62 : vector<8x128xf32>
    %64 = math.tanh %58 : vector<8x128xf32>
    %65 = vector.extract_strided_slice %63 {offsets = [0, 0], sizes = [8, 32], strides = [1, 1]} : vector<8x128xf32> to vector<8x32xf32>
    %66 = vector.extract_strided_slice %63 {offsets = [0, 32], sizes = [8, 32], strides = [1, 1]} : vector<8x128xf32> to vector<8x32xf32>
    %67 = vector.extract_strided_slice %64 {offsets = [0, 64], sizes = [8, 32], strides = [1, 1]} : vector<8x128xf32> to vector<8x32xf32>
    %68 = vector.extract_strided_slice %63 {offsets = [0, 96], sizes = [8, 32], strides = [1, 1]} : vector<8x128xf32> to vector<8x32xf32>
    %69 = arith.mulf %66, %32 : vector<8x32xf32>
    %70 = arith.mulf %65, %67 : vector<8x32xf32>
    %71 = arith.addf %69, %70 : vector<8x32xf32>
    %72 = math.tanh %71 : vector<8x32xf32>
    %73 = arith.mulf %68, %72 : vector<8x32xf32>
    %cst_29 = arith.constant dense<0.000000e+00> : vector<8x128xf32>
    %74 = tpu.matmul %73, %1, %cst_29 {dimension_numbers = #tpu.dot_dimension_numbers<[1], [0], [0], [1], [0, 0, 1, 1], [], []>} : vector<8x32xf32>, vector<32x128xf32>, vector<8x128xf32> -> vector<8x128xf32>
    %75 = arith.addf %53, %74 : vector<8x128xf32>
    %76 = arith.addf %75, %5 : vector<8x128xf32>
    %77 = arith.negf %76 : vector<8x128xf32>
    %78 = math.exp %77 : vector<8x128xf32>
    %cst_30 = arith.constant 1.000000e+00 : f32
    %79 = vector.broadcast %cst_30 : f32 to vector<8x128xf32>
    %80 = arith.addf %79, %78 : vector<8x128xf32>
    %81 = arith.divf %79, %80 : vector<8x128xf32>
    %82 = math.tanh %76 : vector<8x128xf32>
    %83 = vector.extract_strided_slice %81 {offsets = [0, 0], sizes = [8, 32], strides = [1, 1]} : vector<8x128xf32> to vector<8x32xf32>
    %84 = vector.extract_strided_slice %81 {offsets = [0, 32], sizes = [8, 32], strides = [1, 1]} : vector<8x128xf32> to vector<8x32xf32>
    %85 = vector.extract_strided_slice %82 {offsets = [0, 64], sizes = [8, 32], strides = [1, 1]} : vector<8x128xf32> to vector<8x32xf32>
    %86 = vector.extract_strided_slice %81 {offsets = [0, 96], sizes = [8, 32], strides = [1, 1]} : vector<8x128xf32> to vector<8x32xf32>
    %87 = arith.mulf %84, %50 : vector<8x32xf32>
    %88 = arith.mulf %83, %85 : vector<8x32xf32>
    %89 = arith.addf %87, %88 : vector<8x32xf32>
    %90 = math.tanh %89 : vector<8x32xf32>
    %91 = arith.mulf %86, %90 : vector<8x32xf32>
    %c2_i32 = arith.constant 2 : i32
    %cst_31 = arith.constant dense<0.000000e+00> : vector<8x128xf32>
    %92 = tpu.matmul %91, %2, %cst_31 {dimension_numbers = #tpu.dot_dimension_numbers<[1], [0], [0], [1], [0, 0, 1, 1], [], []>} : vector<8x32xf32>, vector<32x128xf32>, vector<8x128xf32> -> vector<8x128xf32>
    %93 = arith.index_cast %c2_i32 : i32 to index
    %c0_32 = arith.constant 0 : index
    %c0_33 = arith.constant 0 : index
    %94 = vector.load %arg0[%93, %c0_32, %c0_33] : memref<8x8x128xf32, #tpu.memory_space<vmem>>, vector<1x8x128xf32>
    %95 = vector.shape_cast %94 : vector<1x8x128xf32> to vector<8x128xf32>
    %cst_34 = arith.constant dense<0.000000e+00> : vector<8x128xf32>
    %96 = tpu.matmul %73, %0, %cst_34 {dimension_numbers = #tpu.dot_dimension_numbers<[1], [0], [0], [1], [0, 0, 1, 1], [], []>} : vector<8x32xf32>, vector<32x128xf32>, vector<8x128xf32> -> vector<8x128xf32>
    %97 = arith.addf %95, %96 : vector<8x128xf32>
    %98 = arith.negf %97 : vector<8x128xf32>
    %99 = math.exp %98 : vector<8x128xf32>
    %cst_35 = arith.constant 1.000000e+00 : f32
    %100 = vector.broadcast %cst_35 : f32 to vector<8x128xf32>
    %101 = arith.addf %100, %99 : vector<8x128xf32>
    %102 = arith.divf %100, %101 : vector<8x128xf32>
    %103 = math.tanh %97 : vector<8x128xf32>
    %104 = vector.extract_strided_slice %102 {offsets = [0, 0], sizes = [8, 32], strides = [1, 1]} : vector<8x128xf32> to vector<8x32xf32>
    %105 = vector.extract_strided_slice %102 {offsets = [0, 32], sizes = [8, 32], strides = [1, 1]} : vector<8x128xf32> to vector<8x32xf32>
    %106 = vector.extract_strided_slice %103 {offsets = [0, 64], sizes = [8, 32], strides = [1, 1]} : vector<8x128xf32> to vector<8x32xf32>
    %107 = vector.extract_strided_slice %102 {offsets = [0, 96], sizes = [8, 32], strides = [1, 1]} : vector<8x128xf32> to vector<8x32xf32>
    %108 = arith.mulf %105, %71 : vector<8x32xf32>
    %109 = arith.mulf %104, %106 : vector<8x32xf32>
    %110 = arith.addf %108, %109 : vector<8x32xf32>
    %111 = math.tanh %110 : vector<8x32xf32>
    %112 = arith.mulf %107, %111 : vector<8x32xf32>
    %cst_36 = arith.constant dense<0.000000e+00> : vector<8x128xf32>
    %113 = tpu.matmul %112, %1, %cst_36 {dimension_numbers = #tpu.dot_dimension_numbers<[1], [0], [0], [1], [0, 0, 1, 1], [], []>} : vector<8x32xf32>, vector<32x128xf32>, vector<8x128xf32> -> vector<8x128xf32>
    %114 = arith.addf %92, %113 : vector<8x128xf32>
    %115 = arith.addf %114, %5 : vector<8x128xf32>
    %116 = arith.negf %115 : vector<8x128xf32>
    %117 = math.exp %116 : vector<8x128xf32>
    %cst_37 = arith.constant 1.000000e+00 : f32
    %118 = vector.broadcast %cst_37 : f32 to vector<8x128xf32>
    %119 = arith.addf %118, %117 : vector<8x128xf32>
    %120 = arith.divf %118, %119 : vector<8x128xf32>
    %121 = math.tanh %115 : vector<8x128xf32>
    %122 = vector.extract_strided_slice %120 {offsets = [0, 0], sizes = [8, 32], strides = [1, 1]} : vector<8x128xf32> to vector<8x32xf32>
    %123 = vector.extract_strided_slice %120 {offsets = [0, 32], sizes = [8, 32], strides = [1, 1]} : vector<8x128xf32> to vector<8x32xf32>
    %124 = vector.extract_strided_slice %121 {offsets = [0, 64], sizes = [8, 32], strides = [1, 1]} : vector<8x128xf32> to vector<8x32xf32>
    %125 = vector.extract_strided_slice %120 {offsets = [0, 96], sizes = [8, 32], strides = [1, 1]} : vector<8x128xf32> to vector<8x32xf32>
    %126 = arith.mulf %123, %89 : vector<8x32xf32>
    %127 = arith.mulf %122, %124 : vector<8x32xf32>
    %128 = arith.addf %126, %127 : vector<8x32xf32>
    %129 = math.tanh %128 : vector<8x32xf32>
    %130 = arith.mulf %125, %129 : vector<8x32xf32>
    %c3_i32 = arith.constant 3 : i32
    %cst_38 = arith.constant dense<0.000000e+00> : vector<8x128xf32>
    %131 = tpu.matmul %130, %2, %cst_38 {dimension_numbers = #tpu.dot_dimension_numbers<[1], [0], [0], [1], [0, 0, 1, 1], [], []>} : vector<8x32xf32>, vector<32x128xf32>, vector<8x128xf32> -> vector<8x128xf32>
    %132 = arith.index_cast %c3_i32 : i32 to index
    %c0_39 = arith.constant 0 : index
    %c0_40 = arith.constant 0 : index
    %133 = vector.load %arg0[%132, %c0_39, %c0_40] : memref<8x8x128xf32, #tpu.memory_space<vmem>>, vector<1x8x128xf32>
    %134 = vector.shape_cast %133 : vector<1x8x128xf32> to vector<8x128xf32>
    %cst_41 = arith.constant dense<0.000000e+00> : vector<8x128xf32>
    %135 = tpu.matmul %112, %0, %cst_41 {dimension_numbers = #tpu.dot_dimension_numbers<[1], [0], [0], [1], [0, 0, 1, 1], [], []>} : vector<8x32xf32>, vector<32x128xf32>, vector<8x128xf32> -> vector<8x128xf32>
    %136 = arith.addf %134, %135 : vector<8x128xf32>
    %137 = arith.negf %136 : vector<8x128xf32>
    %138 = math.exp %137 : vector<8x128xf32>
    %cst_42 = arith.constant 1.000000e+00 : f32
    %139 = vector.broadcast %cst_42 : f32 to vector<8x128xf32>
    %140 = arith.addf %139, %138 : vector<8x128xf32>
    %141 = arith.divf %139, %140 : vector<8x128xf32>
    %142 = math.tanh %136 : vector<8x128xf32>
    %143 = vector.extract_strided_slice %141 {offsets = [0, 0], sizes = [8, 32], strides = [1, 1]} : vector<8x128xf32> to vector<8x32xf32>
    %144 = vector.extract_strided_slice %141 {offsets = [0, 32], sizes = [8, 32], strides = [1, 1]} : vector<8x128xf32> to vector<8x32xf32>
    %145 = vector.extract_strided_slice %142 {offsets = [0, 64], sizes = [8, 32], strides = [1, 1]} : vector<8x128xf32> to vector<8x32xf32>
    %146 = vector.extract_strided_slice %141 {offsets = [0, 96], sizes = [8, 32], strides = [1, 1]} : vector<8x128xf32> to vector<8x32xf32>
    %147 = arith.mulf %144, %110 : vector<8x32xf32>
    %148 = arith.mulf %143, %145 : vector<8x32xf32>
    %149 = arith.addf %147, %148 : vector<8x32xf32>
    %150 = math.tanh %149 : vector<8x32xf32>
    %151 = arith.mulf %146, %150 : vector<8x32xf32>
    %cst_43 = arith.constant dense<0.000000e+00> : vector<8x128xf32>
    %152 = tpu.matmul %151, %1, %cst_43 {dimension_numbers = #tpu.dot_dimension_numbers<[1], [0], [0], [1], [0, 0, 1, 1], [], []>} : vector<8x32xf32>, vector<32x128xf32>, vector<8x128xf32> -> vector<8x128xf32>
    %153 = arith.addf %131, %152 : vector<8x128xf32>
    %154 = arith.addf %153, %5 : vector<8x128xf32>
    %155 = arith.negf %154 : vector<8x128xf32>
    %156 = math.exp %155 : vector<8x128xf32>
    %cst_44 = arith.constant 1.000000e+00 : f32
    %157 = vector.broadcast %cst_44 : f32 to vector<8x128xf32>
    %158 = arith.addf %157, %156 : vector<8x128xf32>
    %159 = arith.divf %157, %158 : vector<8x128xf32>
    %160 = math.tanh %154 : vector<8x128xf32>
    %161 = vector.extract_strided_slice %159 {offsets = [0, 0], sizes = [8, 32], strides = [1, 1]} : vector<8x128xf32> to vector<8x32xf32>
    %162 = vector.extract_strided_slice %159 {offsets = [0, 32], sizes = [8, 32], strides = [1, 1]} : vector<8x128xf32> to vector<8x32xf32>
    %163 = vector.extract_strided_slice %160 {offsets = [0, 64], sizes = [8, 32], strides = [1, 1]} : vector<8x128xf32> to vector<8x32xf32>
    %164 = vector.extract_strided_slice %159 {offsets = [0, 96], sizes = [8, 32], strides = [1, 1]} : vector<8x128xf32> to vector<8x32xf32>
    %165 = arith.mulf %162, %128 : vector<8x32xf32>
    %166 = arith.mulf %161, %163 : vector<8x32xf32>
    %167 = arith.addf %165, %166 : vector<8x32xf32>
    %168 = math.tanh %167 : vector<8x32xf32>
    %169 = arith.mulf %164, %168 : vector<8x32xf32>
    %c4_i32 = arith.constant 4 : i32
    %cst_45 = arith.constant dense<0.000000e+00> : vector<8x128xf32>
    %170 = tpu.matmul %169, %2, %cst_45 {dimension_numbers = #tpu.dot_dimension_numbers<[1], [0], [0], [1], [0, 0, 1, 1], [], []>} : vector<8x32xf32>, vector<32x128xf32>, vector<8x128xf32> -> vector<8x128xf32>
    %171 = arith.index_cast %c4_i32 : i32 to index
    %c0_46 = arith.constant 0 : index
    %c0_47 = arith.constant 0 : index
    %172 = vector.load %arg0[%171, %c0_46, %c0_47] : memref<8x8x128xf32, #tpu.memory_space<vmem>>, vector<1x8x128xf32>
    %173 = vector.shape_cast %172 : vector<1x8x128xf32> to vector<8x128xf32>
    %cst_48 = arith.constant dense<0.000000e+00> : vector<8x128xf32>
    %174 = tpu.matmul %151, %0, %cst_48 {dimension_numbers = #tpu.dot_dimension_numbers<[1], [0], [0], [1], [0, 0, 1, 1], [], []>} : vector<8x32xf32>, vector<32x128xf32>, vector<8x128xf32> -> vector<8x128xf32>
    %175 = arith.addf %173, %174 : vector<8x128xf32>
    %176 = arith.negf %175 : vector<8x128xf32>
    %177 = math.exp %176 : vector<8x128xf32>
    %cst_49 = arith.constant 1.000000e+00 : f32
    %178 = vector.broadcast %cst_49 : f32 to vector<8x128xf32>
    %179 = arith.addf %178, %177 : vector<8x128xf32>
    %180 = arith.divf %178, %179 : vector<8x128xf32>
    %181 = math.tanh %175 : vector<8x128xf32>
    %182 = vector.extract_strided_slice %180 {offsets = [0, 0], sizes = [8, 32], strides = [1, 1]} : vector<8x128xf32> to vector<8x32xf32>
    %183 = vector.extract_strided_slice %180 {offsets = [0, 32], sizes = [8, 32], strides = [1, 1]} : vector<8x128xf32> to vector<8x32xf32>
    %184 = vector.extract_strided_slice %181 {offsets = [0, 64], sizes = [8, 32], strides = [1, 1]} : vector<8x128xf32> to vector<8x32xf32>
    %185 = vector.extract_strided_slice %180 {offsets = [0, 96], sizes = [8, 32], strides = [1, 1]} : vector<8x128xf32> to vector<8x32xf32>
    %186 = arith.mulf %183, %149 : vector<8x32xf32>
    %187 = arith.mulf %182, %184 : vector<8x32xf32>
    %188 = arith.addf %186, %187 : vector<8x32xf32>
    %189 = math.tanh %188 : vector<8x32xf32>
    %190 = arith.mulf %185, %189 : vector<8x32xf32>
    %cst_50 = arith.constant dense<0.000000e+00> : vector<8x128xf32>
    %191 = tpu.matmul %190, %1, %cst_50 {dimension_numbers = #tpu.dot_dimension_numbers<[1], [0], [0], [1], [0, 0, 1, 1], [], []>} : vector<8x32xf32>, vector<32x128xf32>, vector<8x128xf32> -> vector<8x128xf32>
    %192 = arith.addf %170, %191 : vector<8x128xf32>
    %193 = arith.addf %192, %5 : vector<8x128xf32>
    %194 = arith.negf %193 : vector<8x128xf32>
    %195 = math.exp %194 : vector<8x128xf32>
    %cst_51 = arith.constant 1.000000e+00 : f32
    %196 = vector.broadcast %cst_51 : f32 to vector<8x128xf32>
    %197 = arith.addf %196, %195 : vector<8x128xf32>
    %198 = arith.divf %196, %197 : vector<8x128xf32>
    %199 = math.tanh %193 : vector<8x128xf32>
    %200 = vector.extract_strided_slice %198 {offsets = [0, 0], sizes = [8, 32], strides = [1, 1]} : vector<8x128xf32> to vector<8x32xf32>
    %201 = vector.extract_strided_slice %198 {offsets = [0, 32], sizes = [8, 32], strides = [1, 1]} : vector<8x128xf32> to vector<8x32xf32>
    %202 = vector.extract_strided_slice %199 {offsets = [0, 64], sizes = [8, 32], strides = [1, 1]} : vector<8x128xf32> to vector<8x32xf32>
    %203 = vector.extract_strided_slice %198 {offsets = [0, 96], sizes = [8, 32], strides = [1, 1]} : vector<8x128xf32> to vector<8x32xf32>
    %204 = arith.mulf %201, %167 : vector<8x32xf32>
    %205 = arith.mulf %200, %202 : vector<8x32xf32>
    %206 = arith.addf %204, %205 : vector<8x32xf32>
    %207 = math.tanh %206 : vector<8x32xf32>
    %208 = arith.mulf %203, %207 : vector<8x32xf32>
    %c5_i32 = arith.constant 5 : i32
    %cst_52 = arith.constant dense<0.000000e+00> : vector<8x128xf32>
    %209 = tpu.matmul %208, %2, %cst_52 {dimension_numbers = #tpu.dot_dimension_numbers<[1], [0], [0], [1], [0, 0, 1, 1], [], []>} : vector<8x32xf32>, vector<32x128xf32>, vector<8x128xf32> -> vector<8x128xf32>
    %210 = arith.index_cast %c5_i32 : i32 to index
    %c0_53 = arith.constant 0 : index
    %c0_54 = arith.constant 0 : index
    %211 = vector.load %arg0[%210, %c0_53, %c0_54] : memref<8x8x128xf32, #tpu.memory_space<vmem>>, vector<1x8x128xf32>
    %212 = vector.shape_cast %211 : vector<1x8x128xf32> to vector<8x128xf32>
    %cst_55 = arith.constant dense<0.000000e+00> : vector<8x128xf32>
    %213 = tpu.matmul %190, %0, %cst_55 {dimension_numbers = #tpu.dot_dimension_numbers<[1], [0], [0], [1], [0, 0, 1, 1], [], []>} : vector<8x32xf32>, vector<32x128xf32>, vector<8x128xf32> -> vector<8x128xf32>
    %214 = arith.addf %212, %213 : vector<8x128xf32>
    %215 = arith.negf %214 : vector<8x128xf32>
    %216 = math.exp %215 : vector<8x128xf32>
    %cst_56 = arith.constant 1.000000e+00 : f32
    %217 = vector.broadcast %cst_56 : f32 to vector<8x128xf32>
    %218 = arith.addf %217, %216 : vector<8x128xf32>
    %219 = arith.divf %217, %218 : vector<8x128xf32>
    %220 = math.tanh %214 : vector<8x128xf32>
    %221 = vector.extract_strided_slice %219 {offsets = [0, 0], sizes = [8, 32], strides = [1, 1]} : vector<8x128xf32> to vector<8x32xf32>
    %222 = vector.extract_strided_slice %219 {offsets = [0, 32], sizes = [8, 32], strides = [1, 1]} : vector<8x128xf32> to vector<8x32xf32>
    %223 = vector.extract_strided_slice %220 {offsets = [0, 64], sizes = [8, 32], strides = [1, 1]} : vector<8x128xf32> to vector<8x32xf32>
    %224 = vector.extract_strided_slice %219 {offsets = [0, 96], sizes = [8, 32], strides = [1, 1]} : vector<8x128xf32> to vector<8x32xf32>
    %225 = arith.mulf %222, %188 : vector<8x32xf32>
    %226 = arith.mulf %221, %223 : vector<8x32xf32>
    %227 = arith.addf %225, %226 : vector<8x32xf32>
    %228 = math.tanh %227 : vector<8x32xf32>
    %229 = arith.mulf %224, %228 : vector<8x32xf32>
    %cst_57 = arith.constant dense<0.000000e+00> : vector<8x128xf32>
    %230 = tpu.matmul %229, %1, %cst_57 {dimension_numbers = #tpu.dot_dimension_numbers<[1], [0], [0], [1], [0, 0, 1, 1], [], []>} : vector<8x32xf32>, vector<32x128xf32>, vector<8x128xf32> -> vector<8x128xf32>
    %231 = arith.addf %209, %230 : vector<8x128xf32>
    %232 = arith.addf %231, %5 : vector<8x128xf32>
    %233 = arith.negf %232 : vector<8x128xf32>
    %234 = math.exp %233 : vector<8x128xf32>
    %cst_58 = arith.constant 1.000000e+00 : f32
    %235 = vector.broadcast %cst_58 : f32 to vector<8x128xf32>
    %236 = arith.addf %235, %234 : vector<8x128xf32>
    %237 = arith.divf %235, %236 : vector<8x128xf32>
    %238 = math.tanh %232 : vector<8x128xf32>
    %239 = vector.extract_strided_slice %237 {offsets = [0, 0], sizes = [8, 32], strides = [1, 1]} : vector<8x128xf32> to vector<8x32xf32>
    %240 = vector.extract_strided_slice %237 {offsets = [0, 32], sizes = [8, 32], strides = [1, 1]} : vector<8x128xf32> to vector<8x32xf32>
    %241 = vector.extract_strided_slice %238 {offsets = [0, 64], sizes = [8, 32], strides = [1, 1]} : vector<8x128xf32> to vector<8x32xf32>
    %242 = vector.extract_strided_slice %237 {offsets = [0, 96], sizes = [8, 32], strides = [1, 1]} : vector<8x128xf32> to vector<8x32xf32>
    %243 = arith.mulf %240, %206 : vector<8x32xf32>
    %244 = arith.mulf %239, %241 : vector<8x32xf32>
    %245 = arith.addf %243, %244 : vector<8x32xf32>
    %246 = math.tanh %245 : vector<8x32xf32>
    %247 = arith.mulf %242, %246 : vector<8x32xf32>
    %c6_i32 = arith.constant 6 : i32
    %cst_59 = arith.constant dense<0.000000e+00> : vector<8x128xf32>
    %248 = tpu.matmul %247, %2, %cst_59 {dimension_numbers = #tpu.dot_dimension_numbers<[1], [0], [0], [1], [0, 0, 1, 1], [], []>} : vector<8x32xf32>, vector<32x128xf32>, vector<8x128xf32> -> vector<8x128xf32>
    %249 = arith.index_cast %c6_i32 : i32 to index
    %c0_60 = arith.constant 0 : index
    %c0_61 = arith.constant 0 : index
    %250 = vector.load %arg0[%249, %c0_60, %c0_61] : memref<8x8x128xf32, #tpu.memory_space<vmem>>, vector<1x8x128xf32>
    %251 = vector.shape_cast %250 : vector<1x8x128xf32> to vector<8x128xf32>
    %cst_62 = arith.constant dense<0.000000e+00> : vector<8x128xf32>
    %252 = tpu.matmul %229, %0, %cst_62 {dimension_numbers = #tpu.dot_dimension_numbers<[1], [0], [0], [1], [0, 0, 1, 1], [], []>} : vector<8x32xf32>, vector<32x128xf32>, vector<8x128xf32> -> vector<8x128xf32>
    %253 = arith.addf %251, %252 : vector<8x128xf32>
    %254 = arith.negf %253 : vector<8x128xf32>
    %255 = math.exp %254 : vector<8x128xf32>
    %cst_63 = arith.constant 1.000000e+00 : f32
    %256 = vector.broadcast %cst_63 : f32 to vector<8x128xf32>
    %257 = arith.addf %256, %255 : vector<8x128xf32>
    %258 = arith.divf %256, %257 : vector<8x128xf32>
    %259 = math.tanh %253 : vector<8x128xf32>
    %260 = vector.extract_strided_slice %258 {offsets = [0, 0], sizes = [8, 32], strides = [1, 1]} : vector<8x128xf32> to vector<8x32xf32>
    %261 = vector.extract_strided_slice %258 {offsets = [0, 32], sizes = [8, 32], strides = [1, 1]} : vector<8x128xf32> to vector<8x32xf32>
    %262 = vector.extract_strided_slice %259 {offsets = [0, 64], sizes = [8, 32], strides = [1, 1]} : vector<8x128xf32> to vector<8x32xf32>
    %263 = vector.extract_strided_slice %258 {offsets = [0, 96], sizes = [8, 32], strides = [1, 1]} : vector<8x128xf32> to vector<8x32xf32>
    %264 = arith.mulf %261, %227 : vector<8x32xf32>
    %265 = arith.mulf %260, %262 : vector<8x32xf32>
    %266 = arith.addf %264, %265 : vector<8x32xf32>
    %267 = math.tanh %266 : vector<8x32xf32>
    %268 = arith.mulf %263, %267 : vector<8x32xf32>
    %cst_64 = arith.constant dense<0.000000e+00> : vector<8x128xf32>
    %269 = tpu.matmul %268, %1, %cst_64 {dimension_numbers = #tpu.dot_dimension_numbers<[1], [0], [0], [1], [0, 0, 1, 1], [], []>} : vector<8x32xf32>, vector<32x128xf32>, vector<8x128xf32> -> vector<8x128xf32>
    %270 = arith.addf %248, %269 : vector<8x128xf32>
    %271 = arith.addf %270, %5 : vector<8x128xf32>
    %272 = arith.negf %271 : vector<8x128xf32>
    %273 = math.exp %272 : vector<8x128xf32>
    %cst_65 = arith.constant 1.000000e+00 : f32
    %274 = vector.broadcast %cst_65 : f32 to vector<8x128xf32>
    %275 = arith.addf %274, %273 : vector<8x128xf32>
    %276 = arith.divf %274, %275 : vector<8x128xf32>
    %277 = math.tanh %271 : vector<8x128xf32>
    %278 = vector.extract_strided_slice %276 {offsets = [0, 0], sizes = [8, 32], strides = [1, 1]} : vector<8x128xf32> to vector<8x32xf32>
    %279 = vector.extract_strided_slice %276 {offsets = [0, 32], sizes = [8, 32], strides = [1, 1]} : vector<8x128xf32> to vector<8x32xf32>
    %280 = vector.extract_strided_slice %277 {offsets = [0, 64], sizes = [8, 32], strides = [1, 1]} : vector<8x128xf32> to vector<8x32xf32>
    %281 = vector.extract_strided_slice %276 {offsets = [0, 96], sizes = [8, 32], strides = [1, 1]} : vector<8x128xf32> to vector<8x32xf32>
    %282 = arith.mulf %279, %245 : vector<8x32xf32>
    %283 = arith.mulf %278, %280 : vector<8x32xf32>
    %284 = arith.addf %282, %283 : vector<8x32xf32>
    %285 = math.tanh %284 : vector<8x32xf32>
    %286 = arith.mulf %281, %285 : vector<8x32xf32>
    %c7_i32 = arith.constant 7 : i32
    %cst_66 = arith.constant dense<0.000000e+00> : vector<8x128xf32>
    %287 = tpu.matmul %286, %2, %cst_66 {dimension_numbers = #tpu.dot_dimension_numbers<[1], [0], [0], [1], [0, 0, 1, 1], [], []>} : vector<8x32xf32>, vector<32x128xf32>, vector<8x128xf32> -> vector<8x128xf32>
    %288 = arith.index_cast %c7_i32 : i32 to index
    %c0_67 = arith.constant 0 : index
    %c0_68 = arith.constant 0 : index
    %289 = vector.load %arg0[%288, %c0_67, %c0_68] : memref<8x8x128xf32, #tpu.memory_space<vmem>>, vector<1x8x128xf32>
    %290 = vector.shape_cast %289 : vector<1x8x128xf32> to vector<8x128xf32>
    %cst_69 = arith.constant dense<0.000000e+00> : vector<8x128xf32>
    %291 = tpu.matmul %268, %0, %cst_69 {dimension_numbers = #tpu.dot_dimension_numbers<[1], [0], [0], [1], [0, 0, 1, 1], [], []>} : vector<8x32xf32>, vector<32x128xf32>, vector<8x128xf32> -> vector<8x128xf32>
    %292 = arith.addf %290, %291 : vector<8x128xf32>
    %293 = arith.negf %292 : vector<8x128xf32>
    %294 = math.exp %293 : vector<8x128xf32>
    %cst_70 = arith.constant 1.000000e+00 : f32
    %295 = vector.broadcast %cst_70 : f32 to vector<8x128xf32>
    %296 = arith.addf %295, %294 : vector<8x128xf32>
    %297 = arith.divf %295, %296 : vector<8x128xf32>
    %298 = math.tanh %292 : vector<8x128xf32>
    %299 = vector.extract_strided_slice %297 {offsets = [0, 0], sizes = [8, 32], strides = [1, 1]} : vector<8x128xf32> to vector<8x32xf32>
    %300 = vector.extract_strided_slice %297 {offsets = [0, 32], sizes = [8, 32], strides = [1, 1]} : vector<8x128xf32> to vector<8x32xf32>
    %301 = vector.extract_strided_slice %298 {offsets = [0, 64], sizes = [8, 32], strides = [1, 1]} : vector<8x128xf32> to vector<8x32xf32>
    %302 = vector.extract_strided_slice %297 {offsets = [0, 96], sizes = [8, 32], strides = [1, 1]} : vector<8x128xf32> to vector<8x32xf32>
    %303 = arith.mulf %300, %266 : vector<8x32xf32>
    %304 = arith.mulf %299, %301 : vector<8x32xf32>
    %305 = arith.addf %303, %304 : vector<8x32xf32>
    %306 = math.tanh %305 : vector<8x32xf32>
    %307 = arith.mulf %302, %306 : vector<8x32xf32>
    %cst_71 = arith.constant dense<0.000000e+00> : vector<8x128xf32>
    %308 = tpu.matmul %307, %1, %cst_71 {dimension_numbers = #tpu.dot_dimension_numbers<[1], [0], [0], [1], [0, 0, 1, 1], [], []>} : vector<8x32xf32>, vector<32x128xf32>, vector<8x128xf32> -> vector<8x128xf32>
    %309 = arith.addf %287, %308 : vector<8x128xf32>
    %310 = arith.addf %309, %5 : vector<8x128xf32>
    %311 = arith.negf %310 : vector<8x128xf32>
    %312 = math.exp %311 : vector<8x128xf32>
    %cst_72 = arith.constant 1.000000e+00 : f32
    %313 = vector.broadcast %cst_72 : f32 to vector<8x128xf32>
    %314 = arith.addf %313, %312 : vector<8x128xf32>
    %315 = arith.divf %313, %314 : vector<8x128xf32>
    %316 = math.tanh %310 : vector<8x128xf32>
    %317 = vector.extract_strided_slice %315 {offsets = [0, 0], sizes = [8, 32], strides = [1, 1]} : vector<8x128xf32> to vector<8x32xf32>
    %318 = vector.extract_strided_slice %315 {offsets = [0, 32], sizes = [8, 32], strides = [1, 1]} : vector<8x128xf32> to vector<8x32xf32>
    %319 = vector.extract_strided_slice %316 {offsets = [0, 64], sizes = [8, 32], strides = [1, 1]} : vector<8x128xf32> to vector<8x32xf32>
    %320 = vector.extract_strided_slice %315 {offsets = [0, 96], sizes = [8, 32], strides = [1, 1]} : vector<8x128xf32> to vector<8x32xf32>
    %321 = arith.mulf %318, %284 : vector<8x32xf32>
    %322 = arith.mulf %317, %319 : vector<8x32xf32>
    %323 = arith.addf %321, %322 : vector<8x32xf32>
    %324 = math.tanh %323 : vector<8x32xf32>
    %325 = arith.mulf %320, %324 : vector<8x32xf32>
    %c8_i32 = arith.constant 8 : i32
    %c0_73 = arith.constant 0 : index
    %c0_74 = arith.constant 0 : index
    %c0_75 = arith.constant 0 : index
    %326 = vector.load %arg10[%c0_73, %c0_74, %c0_75] : memref<2x8x32xf32, #tpu.memory_space<vmem>>, vector<1x8x32xf32>
    %327 = vector.shape_cast %326 : vector<1x8x32xf32> to vector<8x32xf32>
    %328 = vector.shape_cast %307 : vector<8x32xf32> to vector<1x8x32xf32>
    tpu.vector_store %arg10[%c0_73, %c0_74, %c0_75], %328 {strides = array<i32>} : memref<2x8x32xf32, #tpu.memory_space<vmem>>, vector<1x8x32xf32>,
    %c1_76 = arith.constant 1 : index
    %c0_77 = arith.constant 0 : index
    %c0_78 = arith.constant 0 : index
    %329 = vector.load %arg10[%c1_76, %c0_77, %c0_78] : memref<2x8x32xf32, #tpu.memory_space<vmem>>, vector<1x8x32xf32>
    %330 = vector.shape_cast %329 : vector<1x8x32xf32> to vector<8x32xf32>
    %331 = vector.shape_cast %325 : vector<8x32xf32> to vector<1x8x32xf32>
    tpu.vector_store %arg10[%c1_76, %c0_77, %c0_78], %331 {strides = array<i32>} : memref<2x8x32xf32, #tpu.memory_space<vmem>>, vector<1x8x32xf32>,
    %c0_79 = arith.constant 0 : index
    %c0_80 = arith.constant 0 : index
    %c0_81 = arith.constant 0 : index
    %332 = vector.load %arg11[%c0_79, %c0_80, %c0_81] : memref<2x8x32xf32, #tpu.memory_space<vmem>>, vector<1x8x32xf32>
    %333 = vector.shape_cast %332 : vector<1x8x32xf32> to vector<8x32xf32>
    %334 = vector.shape_cast %305 : vector<8x32xf32> to vector<1x8x32xf32>
    tpu.vector_store %arg11[%c0_79, %c0_80, %c0_81], %334 {strides = array<i32>} : memref<2x8x32xf32, #tpu.memory_space<vmem>>, vector<1x8x32xf32>,
    %c1_82 = arith.constant 1 : index
    %c0_83 = arith.constant 0 : index
    %c0_84 = arith.constant 0 : index
    %335 = vector.load %arg11[%c1_82, %c0_83, %c0_84] : memref<2x8x32xf32, #tpu.memory_space<vmem>>, vector<1x8x32xf32>
    %336 = vector.shape_cast %335 : vector<1x8x32xf32> to vector<8x32xf32>
    %337 = vector.shape_cast %323 : vector<8x32xf32> to vector<1x8x32xf32>
    tpu.vector_store %arg11[%c1_82, %c0_83, %c0_84], %337 {strides = array<i32>} : memref<2x8x32xf32, #tpu.memory_space<vmem>>, vector<1x8x32xf32>,
    %c0_85 = arith.constant 0 : index
    %c0_86 = arith.constant 0 : index
    %338 = vector.load %arg5[%c0_85, %c0_86] : memref<32x128xf32, #tpu.memory_space<vmem>>, vector<32x128xf32>
    %cst_87 = arith.constant dense<0.000000e+00> : vector<8x128xf32>
    %339 = tpu.matmul %325, %338, %cst_87 {dimension_numbers = #tpu.dot_dimension_numbers<[1], [0], [0], [1], [0, 0, 1, 1], [], []>} : vector<8x32xf32>, vector<32x128xf32>, vector<8x128xf32> -> vector<8x128xf32>
    %c0_88 = arith.constant 0 : index
    %c0_89 = arith.constant 0 : index
    %340 = vector.load %arg6[%c0_88, %c0_89] : memref<1x128xf32, #tpu.memory_space<vmem>>, vector<1x128xf32>
    %341 = vector.broadcast %340 : vector<1x128xf32> to vector<8x128xf32>
    %342 = arith.addf %339, %341 : vector<8x128xf32>
    %343 = arith.negf %342 : vector<8x128xf32>
    %344 = math.exp %343 : vector<8x128xf32>
    %cst_90 = arith.constant 1.000000e+00 : f32
    %345 = vector.broadcast %cst_90 : f32 to vector<8x128xf32>
    %346 = arith.addf %345, %344 : vector<8x128xf32>
    %347 = arith.divf %345, %346 : vector<8x128xf32>
    %c0_91 = arith.constant 0 : index
    %c0_92 = arith.constant 0 : index
    %348 = vector.load %arg9[%c0_91, %c0_92] : memref<8x128xf32, #tpu.memory_space<vmem>>, vector<8x128xf32>
    tpu.vector_store %arg9[%c0_91, %c0_92], %347 {strides = array<i32>} : memref<8x128xf32, #tpu.memory_space<vmem>>, vector<8x128xf32>,
    return
  }
}

</mosaic_0001>

<llo_original>
// kernel: sentiment_rnn_forward.1
$region0: #{sentiment_rnn_forward.1}
  #allocation0 [shape = 'u32[]', space=smem, size = 0x4, offset = 0x4, fixed_abs, tag = 'smem constant byte address 0x4 - core index']
  #allocation1 [shape = 'u32[144,128]{1,0:T(1,128)}', space=vmem, size = 0x12000, scoped, tag = 'internal scratch']
  %s0 = inlined_call_operand.vmem [shape: f32[8,8,128], index: 0, kind: input, shape index: {}]
  %s1 = inlined_call_operand.vmem [shape: f32[32,128], index: 1, kind: input, shape index: {}]
  %s2 = inlined_call_operand.vmem [shape: f32[32,128], index: 2, kind: input, shape index: {}]
  %s3 = inlined_call_operand.vmem [shape: f32[32,128], index: 3, kind: input, shape index: {}]
  %s4 = inlined_call_operand.vmem [shape: f32[1,128], index: 4, kind: input, shape index: {}]
  %s5 = inlined_call_operand.vmem [shape: f32[32,128], index: 5, kind: input, shape index: {}]
  %s6 = inlined_call_operand.vmem [shape: f32[1,128], index: 6, kind: input, shape index: {}]
  %s7 = inlined_call_operand.vmem [shape: f32[2,8,32], index: 7, kind: input, shape index: {}]
  %s8 = inlined_call_operand.vmem [shape: f32[2,8,32], index: 8, kind: input, shape index: {}]
  %s9 = inlined_call_operand.vmem [shape: f32[8,128], index: 9, kind: output, shape index: {0}]
  %s10 = inlined_call_operand.vmem [shape: f32[2,8,32], index: 10, kind: output, shape index: {1}]
  %s11 = inlined_call_operand.vmem [shape: f32[2,8,32], index: 11, kind: output, shape index: {2}]
  %12 = xla_tuple %s9, %s10, %s11
  %s13 = sld [smem:[#allocation0]]
  $region62: #{sentiment_rnn_forward.1} parent=0
    _
  %s15 = ssub.s32 1, %s13
  %s16 = scalar_select 0, %s15, %s13
  // Predicated region
  $region2: #{sentiment_rnn_forward.1} parent=0 // pred_check
    _
  $region3: #{sentiment_rnn_forward.1} parent=0 // pred_check_branch
    %18 = sbr.rel (0) target = $region5
  $region4: #{sentiment_rnn_forward.1} parent=0 // pred_region
    _
  $region5: #{sentiment_rnn_forward.1} parent=0 // pred_fallthru
    _
  // Predicated region
  $region6: #{sentiment_rnn_forward.1} parent=0 // pred_check
    _
  $region7: #{sentiment_rnn_forward.1} parent=0 // pred_check_branch
    %20 = sbr.rel (0) target = $region9
  $region8: #{sentiment_rnn_forward.1} parent=0 // pred_region
    _
  $region9: #{sentiment_rnn_forward.1} parent=0 // pred_fallthru
    _
  // Predicated region
  $region10: #{sentiment_rnn_forward.1} parent=0 // pred_check
    _
  $region11: #{sentiment_rnn_forward.1} parent=0 // pred_check_branch
    %22 = sbr.rel (0) target = $region13
  $region12: #{sentiment_rnn_forward.1} parent=0 // pred_region
    _
  $region13: #{sentiment_rnn_forward.1} parent=0 // pred_fallthru
    _
  // Predicated region
  $region14: #{sentiment_rnn_forward.1} parent=0 // pred_check
    _
  $region15: #{sentiment_rnn_forward.1} parent=0 // pred_check_branch
    %24 = sbr.rel (0) target = $region17
  $region16: #{sentiment_rnn_forward.1} parent=0 // pred_region
    _
  $region17: #{sentiment_rnn_forward.1} parent=0 // pred_fallthru
    _
  // Predicated region
  $region18: #{sentiment_rnn_forward.1} parent=0 // pred_check
    _
  $region19: #{sentiment_rnn_forward.1} parent=0 // pred_check_branch
    %26 = sbr.rel (0) target = $region21
  $region20: #{sentiment_rnn_forward.1} parent=0 // pred_region
    _
  $region21: #{sentiment_rnn_forward.1} parent=0 // pred_fallthru
    _
  // Predicated region
  $region22: #{sentiment_rnn_forward.1} parent=0 // pred_check
    _
  $region23: #{sentiment_rnn_forward.1} parent=0 // pred_check_branch
    %28 = sbr.rel (0) target = $region25
  $region24: #{sentiment_rnn_forward.1} parent=0 // pred_region
    _
  $region25: #{sentiment_rnn_forward.1} parent=0 // pred_fallthru
    _
  // Predicated region
  $region26: #{sentiment_rnn_forward.1} parent=0 // pred_check
    _
  $region27: #{sentiment_rnn_forward.1} parent=0 // pred_check_branch
    %30 = sbr.rel (0) target = $region29
  $region28: #{sentiment_rnn_forward.1} parent=0 // pred_region
    _
  $region29: #{sentiment_rnn_forward.1} parent=0 // pred_fallthru
    _
  // Predicated region
  $region30: #{sentiment_rnn_forward.1} parent=0 // pred_check
    _
  $region31: #{sentiment_rnn_forward.1} parent=0 // pred_check_branch
    %32 = sbr.rel (0) target = $region33
  $region32: #{sentiment_rnn_forward.1} parent=0 // pred_region
    _
  $region33: #{sentiment_rnn_forward.1} parent=0 // pred_fallthru
    _
  // Predicated region
  $region34: #{sentiment_rnn_forward.1} parent=0 // pred_check
    _
  $region35: #{sentiment_rnn_forward.1} parent=0 // pred_check_branch
    %34 = sbr.rel (0) target = $region37
  $region36: #{sentiment_rnn_forward.1} parent=0 // pred_region
    _
  $region37: #{sentiment_rnn_forward.1} parent=0 // pred_fallthru
    _
  %v35 = vld [vmem:[%s1] sm:$0xff]
  %v36 = vld [vmem:[%s1 + $0x8] sm:$0xff]
  %v37 = vld [vmem:[%s1 + $0x10] sm:$0xff]
  %v38 = vld [vmem:[%s1 + $0x18] sm:$0xff]
  %v39 = vld [vmem:[%s2] sm:$0xff]
  %v40 = vld [vmem:[%s2 + $0x8] sm:$0xff]
  %v41 = vld [vmem:[%s2 + $0x10] sm:$0xff]
  %v42 = vld [vmem:[%s2 + $0x18] sm:$0xff]
  %v43 = vld [vmem:[%s3] sm:$0xff]
  %v44 = vld [vmem:[%s3 + $0x8] sm:$0xff]
  %v45 = vld [vmem:[%s3 + $0x10] sm:$0xff]
  %v46 = vld [vmem:[%s3 + $0x18] sm:$0xff]
  %v47 = vld [vmem:[%s4] sm:$0x1]
  %v49 = vlaneseq
  %v50 = vshrl.u32 %v49, 7
  %v51 = vsub.s32 0, %v50
  %v52 = vrot.slane %v47, %v51
  %v54 = vld [vmem:[%s7] sm:$0xff]
  %v55 = vld [vmem:[%s8] sm:$0xff]
  %s56 = scalar_lea.vmem %s7, 8
  %v57 = vld [vmem:[%s56] sm:$0xff]
  %s58 = scalar_lea.vmem %s8, 8
  %v59 = vld [vmem:[%s58] sm:$0xff]
  %v60 = vld [vmem:[%s0] sm:$0xff]
  %vm61 = vcmask 261120
  %v63 = vsel %vm61, %v54, 0
  %65 = vmatprep.subr.mxu0 0.0
  %66 = vmatpush1.msra.mxu0 %v35
  %67 = vmatprep.subr.mxu0 0.0
  %68 = vmatpush1.msra.mxu0 %v36
  %69 = vmatprep.subr.mxu0 0.0
  %70 = vmatpush1.msra.mxu0 %v37
  %71 = vmatprep.subr.mxu0 0.0
  %72 = vmatpush1.msra.mxu0 %v38
  %73 = vmatprep.subr.mxu0 0.0
  %74 = vmatpush1.msra.mxu0 0.0
  %75 = vmatprep.subr.mxu0 0.0
  %76 = vmatpush1.msra.mxu0 0.0
  %77 = vmatprep.subr.mxu0 0.0
  %78 = vmatpush1.msra.mxu0 0.0
  %79 = vmatprep.subr.mxu0 0.0
  %80 = vmatpush1.msra.mxu0 0.0
  %81 = vmatprep.subr.mxu0 0.0
  %82 = vmatpush1.msra.mxu0 0.0
  %83 = vmatprep.subr.mxu0 0.0
  %84 = vmatpush1.msra.mxu0 0.0
  %85 = vmatprep.subr.mxu0 0.0
  %86 = vmatpush1.msra.mxu0 0.0
  %87 = vmatprep.subr.mxu0 0.0
  %88 = vmatpush1.msra.mxu0 0.0
  %89 = vmatprep.subr.mxu0 0.0
  %90 = vmatpush1.msra.mxu0 0.0
  %91 = vmatprep.subr.mxu0 0.0
  %92 = vmatpush1.msra.mxu0 0.0
  %93 = vmatprep.subr.mxu0 0.0
  %94 = vmatpush1.msra.mxu0 0.0
  %95 = vmatprep.subr.mxu0 0.0
  %96 = vmatpush1.msra.mxu0 0.0
  %97 = vmatprep.subr.mxu0 0.0
  %98 = vmatpush1.msra.mxu0 0.0
  %99 = vmatprep.subr.mxu0 0.0
  %100 = vmatpush1.msra.mxu0 0.0
  %101 = vmatprep.subr.mxu0 0.0
  %102 = vmatpush1.msra.mxu0 0.0
  %103 = vmatprep.subr.mxu0 0.0
  %104 = vmatpush1.msra.mxu0 0.0
  %105 = vmatprep.subr.mxu0 0.0
  %106 = vmatpush1.msra.mxu0 0.0
  %107 = vmatprep.subr.mxu0 0.0
  %108 = vmatpush1.msra.mxu0 0.0
  %109 = vmatprep.subr.mxu0 0.0
  %110 = vmatpush1.msra.mxu0 0.0
  %111 = vmatprep.subr.mxu0 0.0
  %112 = vmatpush1.msra.mxu0 0.0
  %113 = vmatprep.subr.mxu0 0.0
  %114 = vmatpush1.msra.mxu0 0.0
  %115 = vmatprep.subr.mxu0 0.0
  %116 = vmatpush1.msra.mxu0 0.0
  %117 = vmatprep.subr.mxu0 0.0
  %118 = vmatpush1.msra.mxu0 0.0
  %119 = vmatprep.subr.mxu0 0.0
  %120 = vmatpush1.msra.mxu0 0.0
  %121 = vmatprep.subr.mxu0 0.0
  %122 = vmatpush1.msra.mxu0 0.0
  %123 = vmatprep.subr.mxu0 0.0
  %124 = vmatpush1.msra.mxu0 0.0
  %125 = vmatprep.subr.mxu0 0.0
  %126 = vmatpush1.msra.mxu0 0.0
  %127 = vmatprep.subr.mxu0 0.0
  %128 = vmatpush1.msra.mxu0 0.0
  %129 = vmatprep.mubr.f32.mxu0 0.0
  %130 = vmatmul.mubr.f32.gmra.mrb[0].mxu0 %v63
  %v131 = vpop.f32.mrb[0].mxu0
  %v132 = vadd.f32 0.0, %v131
  %v133 = vpop.f32.mrb[0].mxu0
  %134 = vdwg.mxu0
  %v135 = vadd.f32 %v60, %v132
  %v136 = vxor.u32 %v135, 2147483648
  %v137 = vmul.f32 %v136, 1.442695
  %v138 = vpow.pop %v137
  %v139 = vadd.f32 %v138, 1.0
  %v140 = vrcp.pop %v139
  %v141 = vmul.f32 1.0, %v140
  %v142 = vtanh.pop %v135
  %144 = vrot.lane.b32.xlu0 %v55, 32
  %v145 = vpop.permute.xlu0 %144
  %v147 = vmul.f32 %v141, %v145
  %149 = vrot.lane.b32.xlu0 %v142, 64
  %v150 = vpop.permute.xlu0 %149
  %v152 = vmul.f32 %v141, %v150
  %154 = vrot.lane.b32.xlu0 %v152, 32
  %v155 = vpop.permute.xlu0 %154
  %v157 = vadd.f32 %v147, %v155
  %v158 = vtanh.pop %v157
  %160 = vrot.lane.b32.xlu0 %v158, 64
  %v161 = vpop.permute.xlu0 %160
  %v163 = vmul.f32 %v141, %v161
  %165 = vrot.lane.b32.xlu0 %v163, 32
  %v166 = vpop.permute.xlu0 %165
  %v167 = vsel %vm61, %v166, 0
  %169 = vmatprep.subr.mxu0 0.0
  %170 = vmatpush1.msra.mxu0 %v39
  %171 = vmatprep.subr.mxu0 0.0
  %172 = vmatpush1.msra.mxu0 %v40
  %173 = vmatprep.subr.mxu0 0.0
  %174 = vmatpush1.msra.mxu0 %v41
  %175 = vmatprep.subr.mxu0 0.0
  %176 = vmatpush1.msra.mxu0 %v42
  %177 = vmatprep.subr.mxu0 0.0
  %178 = vmatpush1.msra.mxu0 0.0
  %179 = vmatprep.subr.mxu0 0.0
  %180 = vmatpush1.msra.mxu0 0.0
  %181 = vmatprep.subr.mxu0 0.0
  %182 = vmatpush1.msra.mxu0 0.0
  %183 = vmatprep.subr.mxu0 0.0
  %184 = vmatpush1.msra.mxu0 0.0
  %185 = vmatprep.subr.mxu0 0.0
  %186 = vmatpush1.msra.mxu0 0.0
  %187 = vmatprep.subr.mxu0 0.0
  %188 = vmatpush1.msra.mxu0 0.0
  %189 = vmatprep.subr.mxu0 0.0
  %190 = vmatpush1.msra.mxu0 0.0
  %191 = vmatprep.subr.mxu0 0.0
  %192 = vmatpush1.msra.mxu0 0.0
  %193 = vmatprep.subr.mxu0 0.0
  %194 = vmatpush1.msra.mxu0 0.0
  %195 = vmatprep.subr.mxu0 0.0
  %196 = vmatpush1.msra.mxu0 0.0
  %197 = vmatprep.subr.mxu0 0.0
  %198 = vmatpush1.msra.mxu0 0.0
  %199 = vmatprep.subr.mxu0 0.0
  %200 = vmatpush1.msra.mxu0 0.0
  %201 = vmatprep.subr.mxu0 0.0
  %202 = vmatpush1.msra.mxu0 0.0
  %203 = vmatprep.subr.mxu0 0.0
  %204 = vmatpush1.msra.mxu0 0.0
  %205 = vmatprep.subr.mxu0 0.0
  %206 = vmatpush1.msra.mxu0 0.0
  %207 = vmatprep.subr.mxu0 0.0
  %208 = vmatpush1.msra.mxu0 0.0
  %209 = vmatprep.subr.mxu0 0.0
  %210 = vmatpush1.msra.mxu0 0.0
  %211 = vmatprep.subr.mxu0 0.0
  %212 = vmatpush1.msra.mxu0 0.0
  %213 = vmatprep.subr.mxu0 0.0
  %214 = vmatpush1.msra.mxu0 0.0
  %215 = vmatprep.subr.mxu0 0.0
  %216 = vmatpush1.msra.mxu0 0.0
  %217 = vmatprep.subr.mxu0 0.0
  %218 = vmatpush1.msra.mxu0 0.0
  %219 = vmatprep.subr.mxu0 0.0
  %220 = vmatpush1.msra.mxu0 0.0
  %221 = vmatprep.subr.mxu0 0.0
  %222 = vmatpush1.msra.mxu0 0.0
  %223 = vmatprep.subr.mxu0 0.0
  %224 = vmatpush1.msra.mxu0 0.0
  %225 = vmatprep.subr.mxu0 0.0
  %226 = vmatpush1.msra.mxu0 0.0
  %227 = vmatprep.subr.mxu0 0.0
  %228 = vmatpush1.msra.mxu0 0.0
  %229 = vmatprep.subr.mxu0 0.0
  %230 = vmatpush1.msra.mxu0 0.0
  %231 = vmatprep.subr.mxu0 0.0
  %232 = vmatpush1.msra.mxu0 0.0
  %233 = vmatprep.mubr.f32.mxu0 0.0
  %234 = vmatmul.mubr.f32.gmra.mrb[0].mxu0 %v167
  %v235 = vpop.f32.mrb[0].mxu0
  %v236 = vadd.f32 0.0, %v235
  %v237 = vpop.f32.mrb[0].mxu0
  %238 = vdwg.mxu0
  %v240 = vsel %vm61, %v57, 0
  %242 = vmatprep.subr.mxu0 0.0
  %243 = vmatpush1.msra.mxu0 %v43
  %244 = vmatprep.subr.mxu0 0.0
  %245 = vmatpush1.msra.mxu0 %v44
  %246 = vmatprep.subr.mxu0 0.0
  %247 = vmatpush1.msra.mxu0 %v45
  %248 = vmatprep.subr.mxu0 0.0
  %249 = vmatpush1.msra.mxu0 %v46
  %250 = vmatprep.subr.mxu0 0.0
  %251 = vmatpush1.msra.mxu0 0.0
  %252 = vmatprep.subr.mxu0 0.0
  %253 = vmatpush1.msra.mxu0 0.0
  %254 = vmatprep.subr.mxu0 0.0
  %255 = vmatpush1.msra.mxu0 0.0
  %256 = vmatprep.subr.mxu0 0.0
  %257 = vmatpush1.msra.mxu0 0.0
  %258 = vmatprep.subr.mxu0 0.0
  %259 = vmatpush1.msra.mxu0 0.0
  %260 = vmatprep.subr.mxu0 0.0
  %261 = vmatpush1.msra.mxu0 0.0
  %262 = vmatprep.subr.mxu0 0.0
  %263 = vmatpush1.msra.mxu0 0.0
  %264 = vmatprep.subr.mxu0 0.0
  %265 = vmatpush1.msra.mxu0 0.0
  %266 = vmatprep.subr.mxu0 0.0
  %267 = vmatpush1.msra.mxu0 0.0
  %268 = vmatprep.subr.mxu0 0.0
  %269 = vmatpush1.msra.mxu0 0.0
  %270 = vmatprep.subr.mxu0 0.0
  %271 = vmatpush1.msra.mxu0 0.0
  %272 = vmatprep.subr.mxu0 0.0
  %273 = vmatpush1.msra.mxu0 0.0
  %274 = vmatprep.subr.mxu0 0.0
  %275 = vmatpush1.msra.mxu0 0.0
  %276 = vmatprep.subr.mxu0 0.0
  %277 = vmatpush1.msra.mxu0 0.0
  %278 = vmatprep.subr.mxu0 0.0
  %279 = vmatpush1.msra.mxu0 0.0
  %280 = vmatprep.subr.mxu0 0.0
  %281 = vmatpush1.msra.mxu0 0.0
  %282 = vmatprep.subr.mxu0 0.0
  %283 = vmatpush1.msra.mxu0 0.0
  %284 = vmatprep.subr.mxu0 0.0
  %285 = vmatpush1.msra.mxu0 0.0
  %286 = vmatprep.subr.mxu0 0.0
  %287 = vmatpush1.msra.mxu0 0.0
  %288 = vmatprep.subr.mxu0 0.0
  %289 = vmatpush1.msra.mxu0 0.0
  %290 = vmatprep.subr.mxu0 0.0
  %291 = vmatpush1.msra.mxu0 0.0
  %292 = vmatprep.subr.mxu0 0.0
  %293 = vmatpush1.msra.mxu0 0.0
  %294 = vmatprep.subr.mxu0 0.0
  %295 = vmatpush1.msra.mxu0 0.0
  %296 = vmatprep.subr.mxu0 0.0
  %297 = vmatpush1.msra.mxu0 0.0
  %298 = vmatprep.subr.mxu0 0.0
  %299 = vmatpush1.msra.mxu0 0.0
  %300 = vmatprep.subr.mxu0 0.0
  %301 = vmatpush1.msra.mxu0 0.0
  %302 = vmatprep.subr.mxu0 0.0
  %303 = vmatpush1.msra.mxu0 0.0
  %304 = vmatprep.subr.mxu0 0.0
  %305 = vmatpush1.msra.mxu0 0.0
  %306 = vmatprep.mubr.f32.mxu0 0.0
  %307 = vmatmul.mubr.f32.gmra.mrb[0].mxu0 %v240
  %v308 = vpop.f32.mrb[0].mxu0
  %v309 = vadd.f32 %v236, %v308
  %v310 = vpop.f32.mrb[0].mxu0
  %311 = vdwg.mxu0
  %v312 = vadd.f32 %v309, %v52
  %v313 = vxor.u32 %v312, 2147483648
  %v314 = vmul.f32 %v313, 1.442695
  %v315 = vpow.pop %v314
  %v316 = vadd.f32 %v315, 1.0
  %v317 = vrcp.pop %v316
  %v318 = vmul.f32 1.0, %v317
  %v319 = vtanh.pop %v312
  %321 = vrot.lane.b32.xlu0 %v59, 32
  %v322 = vpop.permute.xlu0 %321
  %v324 = vmul.f32 %v318, %v322
  %326 = vrot.lane.b32.xlu0 %v319, 64
  %v327 = vpop.permute.xlu0 %326
  %v329 = vmul.f32 %v318, %v327
  %331 = vrot.lane.b32.xlu0 %v329, 32
  %v332 = vpop.permute.xlu0 %331
  %v334 = vadd.f32 %v324, %v332
  %v335 = vtanh.pop %v334
  %337 = vrot.lane.b32.xlu0 %v335, 64
  %v338 = vpop.permute.xlu0 %337
  %v340 = vmul.f32 %v318, %v338
  %s341 = scalar_lea.vmem %s0, 8
  %v342 = vld [vmem:[%s341] sm:$0xff]
  %343 = vmatprep.subr.mxu0 0.0
  %344 = vmatpush1.msra.mxu0 %v35
  %345 = vmatprep.subr.mxu0 0.0
  %346 = vmatpush1.msra.mxu0 %v36
  %347 = vmatprep.subr.mxu0 0.0
  %348 = vmatpush1.msra.mxu0 %v37
  %349 = vmatprep.subr.mxu0 0.0
  %350 = vmatpush1.msra.mxu0 %v38
  %351 = vmatprep.subr.mxu0 0.0
  %352 = vmatpush1.msra.mxu0 0.0
  %353 = vmatprep.subr.mxu0 0.0
  %354 = vmatpush1.msra.mxu0 0.0
  %355 = vmatprep.subr.mxu0 0.0
  %356 = vmatpush1.msra.mxu0 0.0
  %357 = vmatprep.subr.mxu0 0.0
  %358 = vmatpush1.msra.mxu0 0.0
  %359 = vmatprep.subr.mxu0 0.0
  %360 = vmatpush1.msra.mxu0 0.0
  %361 = vmatprep.subr.mxu0 0.0
  %362 = vmatpush1.msra.mxu0 0.0
  %363 = vmatprep.subr.mxu0 0.0
  %364 = vmatpush1.msra.mxu0 0.0
  %365 = vmatprep.subr.mxu0 0.0
  %366 = vmatpush1.msra.mxu0 0.0
  %367 = vmatprep.subr.mxu0 0.0
  %368 = vmatpush1.msra.mxu0 0.0
  %369 = vmatprep.subr.mxu0 0.0
  %370 = vmatpush1.msra.mxu0 0.0
  %371 = vmatprep.subr.mxu0 0.0
  %372 = vmatpush1.msra.mxu0 0.0
  %373 = vmatprep.subr.mxu0 0.0
  %374 = vmatpush1.msra.mxu0 0.0
  %375 = vmatprep.subr.mxu0 0.0
  %376 = vmatpush1.msra.mxu0 0.0
  %377 = vmatprep.subr.mxu0 0.0
  %378 = vmatpush1.msra.mxu0 0.0
  %379 = vmatprep.subr.mxu0 0.0
  %380 = vmatpush1.msra.mxu0 0.0
  %381 = vmatprep.subr.mxu0 0.0
  %382 = vmatpush1.msra.mxu0 0.0
  %383 = vmatprep.subr.mxu0 0.0
  %384 = vmatpush1.msra.mxu0 0.0
  %385 = vmatprep.subr.mxu0 0.0
  %386 = vmatpush1.msra.mxu0 0.0
  %387 = vmatprep.subr.mxu0 0.0
  %388 = vmatpush1.msra.mxu0 0.0
  %389 = vmatprep.subr.mxu0 0.0
  %390 = vmatpush1.msra.mxu0 0.0
  %391 = vmatprep.subr.mxu0 0.0
  %392 = vmatpush1.msra.mxu0 0.0
  %393 = vmatprep.subr.mxu0 0.0
  %394 = vmatpush1.msra.mxu0 0.0
  %395 = vmatprep.subr.mxu0 0.0
  %396 = vmatpush1.msra.mxu0 0.0
  %397 = vmatprep.subr.mxu0 0.0
  %398 = vmatpush1.msra.mxu0 0.0
  %399 = vmatprep.subr.mxu0 0.0
  %400 = vmatpush1.msra.mxu0 0.0
  %401 = vmatprep.subr.mxu0 0.0
  %402 = vmatpush1.msra.mxu0 0.0
  %403 = vmatprep.subr.mxu0 0.0
  %404 = vmatpush1.msra.mxu0 0.0
  %405 = vmatprep.subr.mxu0 0.0
  %406 = vmatpush1.msra.mxu0 0.0
  %407 = vmatprep.mubr.f32.mxu0 0.0
  %408 = vmatmul.mubr.f32.gmra.mrb[0].mxu0 %v167
  %v409 = vpop.f32.mrb[0].mxu0
  %v410 = vadd.f32 0.0, %v409
  %v411 = vpop.f32.mrb[0].mxu0
  %412 = vdwg.mxu0
  %v413 = vadd.f32 %v342, %v410
  %v414 = vxor.u32 %v413, 2147483648
  %v415 = vmul.f32 %v414, 1.442695
  %v416 = vpow.pop %v415
  %v417 = vadd.f32 %v416, 1.0
  %v418 = vrcp.pop %v417
  %v419 = vmul.f32 1.0, %v418
  %v420 = vtanh.pop %v413
  %v421 = vmul.f32 %v419, %v157
  %423 = vrot.lane.b32.xlu0 %v420, 64
  %v424 = vpop.permute.xlu0 %423
  %v426 = vmul.f32 %v419, %v424
  %428 = vrot.lane.b32.xlu0 %v426, 32
  %v429 = vpop.permute.xlu0 %428
  %v431 = vadd.f32 %v421, %v429
  %v432 = vtanh.pop %v431
  %434 = vrot.lane.b32.xlu0 %v432, 64
  %v435 = vpop.permute.xlu0 %434
  %v437 = vmul.f32 %v419, %v435
  %439 = vrot.lane.b32.xlu0 %v437, 32
  %v440 = vpop.permute.xlu0 %439
  %v441 = vsel %vm61, %v440, 0
  %443 = vmatprep.subr.mxu0 0.0
  %444 = vmatpush1.msra.mxu0 %v39
  %445 = vmatprep.subr.mxu0 0.0
  %446 = vmatpush1.msra.mxu0 %v40
  %447 = vmatprep.subr.mxu0 0.0
  %448 = vmatpush1.msra.mxu0 %v41
  %449 = vmatprep.subr.mxu0 0.0
  %450 = vmatpush1.msra.mxu0 %v42
  %451 = vmatprep.subr.mxu0 0.0
  %452 = vmatpush1.msra.mxu0 0.0
  %453 = vmatprep.subr.mxu0 0.0
  %454 = vmatpush1.msra.mxu0 0.0
  %455 = vmatprep.subr.mxu0 0.0
  %456 = vmatpush1.msra.mxu0 0.0
  %457 = vmatprep.subr.mxu0 0.0
  %458 = vmatpush1.msra.mxu0 0.0
  %459 = vmatprep.subr.mxu0 0.0
  %460 = vmatpush1.msra.mxu0 0.0
  %461 = vmatprep.subr.mxu0 0.0
  %462 = vmatpush1.msra.mxu0 0.0
  %463 = vmatprep.subr.mxu0 0.0
  %464 = vmatpush1.msra.mxu0 0.0
  %465 = vmatprep.subr.mxu0 0.0
  %466 = vmatpush1.msra.mxu0 0.0
  %467 = vmatprep.subr.mxu0 0.0
  %468 = vmatpush1.msra.mxu0 0.0
  %469 = vmatprep.subr.mxu0 0.0
  %470 = vmatpush1.msra.mxu0 0.0
  %471 = vmatprep.subr.mxu0 0.0
  %472 = vmatpush1.msra.mxu0 0.0
  %473 = vmatprep.subr.mxu0 0.0
  %474 = vmatpush1.msra.mxu0 0.0
  %475 = vmatprep.subr.mxu0 0.0
  %476 = vmatpush1.msra.mxu0 0.0
  %477 = vmatprep.subr.mxu0 0.0
  %478 = vmatpush1.msra.mxu0 0.0
  %479 = vmatprep.subr.mxu0 0.0
  %480 = vmatpush1.msra.mxu0 0.0
  %481 = vmatprep.subr.mxu0 0.0
  %482 = vmatpush1.msra.mxu0 0.0
  %483 = vmatprep.subr.mxu0 0.0
  %484 = vmatpush1.msra.mxu0 0.0
  %485 = vmatprep.subr.mxu0 0.0
  %486 = vmatpush1.msra.mxu0 0.0
  %487 = vmatprep.subr.mxu0 0.0
  %488 = vmatpush1.msra.mxu0 0.0
  %489 = vmatprep.subr.mxu0 0.0
  %490 = vmatpush1.msra.mxu0 0.0
  %491 = vmatprep.subr.mxu0 0.0
  %492 = vmatpush1.msra.mxu0 0.0
  %493 = vmatprep.subr.mxu0 0.0
  %494 = vmatpush1.msra.mxu0 0.0
  %495 = vmatprep.subr.mxu0 0.0
  %496 = vmatpush1.msra.mxu0 0.0
  %497 = vmatprep.subr.mxu0 0.0
  %498 = vmatpush1.msra.mxu0 0.0
  %499 = vmatprep.subr.mxu0 0.0
  %500 = vmatpush1.msra.mxu0 0.0
  %501 = vmatprep.subr.mxu0 0.0
  %502 = vmatpush1.msra.mxu0 0.0
  %503 = vmatprep.subr.mxu0 0.0
  %504 = vmatpush1.msra.mxu0 0.0
  %505 = vmatprep.subr.mxu0 0.0
  %506 = vmatpush1.msra.mxu0 0.0
  %507 = vmatprep.mubr.f32.mxu0 0.0
  %508 = vmatmul.mubr.f32.gmra.mrb[0].mxu0 %v441
  %v509 = vpop.f32.mrb[0].mxu0
  %v510 = vadd.f32 0.0, %v509
  %v511 = vpop.f32.mrb[0].mxu0
  %512 = vdwg.mxu0
  %514 = vrot.lane.b32.xlu0 %v340, 32
  %v515 = vpop.permute.xlu0 %514
  %v516 = vsel %vm61, %v515, 0
  %518 = vmatprep.subr.mxu0 0.0
  %519 = vmatpush1.msra.mxu0 %v43
  %520 = vmatprep.subr.mxu0 0.0
  %521 = vmatpush1.msra.mxu0 %v44
  %522 = vmatprep.subr.mxu0 0.0
  %523 = vmatpush1.msra.mxu0 %v45
  %524 = vmatprep.subr.mxu0 0.0
  %525 = vmatpush1.msra.mxu0 %v46
  %526 = vmatprep.subr.mxu0 0.0
  %527 = vmatpush1.msra.mxu0 0.0
  %528 = vmatprep.subr.mxu0 0.0
  %529 = vmatpush1.msra.mxu0 0.0
  %530 = vmatprep.subr.mxu0 0.0
  %531 = vmatpush1.msra.mxu0 0.0
  %532 = vmatprep.subr.mxu0 0.0
  %533 = vmatpush1.msra.mxu0 0.0
  %534 = vmatprep.subr.mxu0 0.0
  %535 = vmatpush1.msra.mxu0 0.0
  %536 = vmatprep.subr.mxu0 0.0
  %537 = vmatpush1.msra.mxu0 0.0
  %538 = vmatprep.subr.mxu0 0.0
  %539 = vmatpush1.msra.mxu0 0.0
  %540 = vmatprep.subr.mxu0 0.0
  %541 = vmatpush1.msra.mxu0 0.0
  %542 = vmatprep.subr.mxu0 0.0
  %543 = vmatpush1.msra.mxu0 0.0
  %544 = vmatprep.subr.mxu0 0.0
  %545 = vmatpush1.msra.mxu0 0.0
  %546 = vmatprep.subr.mxu0 0.0
  %547 = vmatpush1.msra.mxu0 0.0
  %548 = vmatprep.subr.mxu0 0.0
  %549 = vmatpush1.msra.mxu0 0.0
  %550 = vmatprep.subr.mxu0 0.0
  %551 = vmatpush1.msra.mxu0 0.0
  %552 = vmatprep.subr.mxu0 0.0
  %553 = vmatpush1.msra.mxu0 0.0
  %554 = vmatprep.subr.mxu0 0.0
  %555 = vmatpush1.msra.mxu0 0.0
  %556 = vmatprep.subr.mxu0 0.0
  %557 = vmatpush1.msra.mxu0 0.0
  %558 = vmatprep.subr.mxu0 0.0
  %559 = vmatpush1.msra.mxu0 0.0
  %560 = vmatprep.subr.mxu0 0.0
  %561 = vmatpush1.msra.mxu0 0.0
  %562 = vmatprep.subr.mxu0 0.0
  %563 = vmatpush1.msra.mxu0 0.0
  %564 = vmatprep.subr.mxu0 0.0
  %565 = vmatpush1.msra.mxu0 0.0
  %566 = vmatprep.subr.mxu0 0.0
  %567 = vmatpush1.msra.mxu0 0.0
  %568 = vmatprep.subr.mxu0 0.0
  %569 = vmatpush1.msra.mxu0 0.0
  %570 = vmatprep.subr.mxu0 0.0
  %571 = vmatpush1.msra.mxu0 0.0
  %572 = vmatprep.subr.mxu0 0.0
  %573 = vmatpush1.msra.mxu0 0.0
  %574 = vmatprep.subr.mxu0 0.0
  %575 = vmatpush1.msra.mxu0 0.0
  %576 = vmatprep.subr.mxu0 0.0
  %577 = vmatpush1.msra.mxu0 0.0
  %578 = vmatprep.subr.mxu0 0.0
  %579 = vmatpush1.msra.mxu0 0.0
  %580 = vmatprep.subr.mxu0 0.0
  %581 = vmatpush1.msra.mxu0 0.0
  %582 = vmatprep.mubr.f32.mxu0 0.0
  %583 = vmatmul.mubr.f32.gmra.mrb[0].mxu0 %v516
  %v584 = vpop.f32.mrb[0].mxu0
  %v585 = vadd.f32 %v510, %v584
  %v586 = vpop.f32.mrb[0].mxu0
  %587 = vdwg.mxu0
  %v588 = vadd.f32 %v585, %v52
  %v589 = vxor.u32 %v588, 2147483648
  %v590 = vmul.f32 %v589, 1.442695
  %v591 = vpow.pop %v590
  %v592 = vadd.f32 %v591, 1.0
  %v593 = vrcp.pop %v592
  %v594 = vmul.f32 1.0, %v593
  %v595 = vtanh.pop %v588
  %v596 = vmul.f32 %v594, %v334
  %598 = vrot.lane.b32.xlu0 %v595, 64
  %v599 = vpop.permute.xlu0 %598
  %v601 = vmul.f32 %v594, %v599
  %603 = vrot.lane.b32.xlu0 %v601, 32
  %v604 = vpop.permute.xlu0 %603
  %v606 = vadd.f32 %v596, %v604
  %v607 = vtanh.pop %v606
  %609 = vrot.lane.b32.xlu0 %v607, 64
  %v610 = vpop.permute.xlu0 %609
  %v612 = vmul.f32 %v594, %v610
  %s613 = scalar_lea.vmem %s0, 16
  %v614 = vld [vmem:[%s613] sm:$0xff]
  %615 = vmatprep.subr.mxu0 0.0
  %616 = vmatpush1.msra.mxu0 %v35
  %617 = vmatprep.subr.mxu0 0.0
  %618 = vmatpush1.msra.mxu0 %v36
  %619 = vmatprep.subr.mxu0 0.0
  %620 = vmatpush1.msra.mxu0 %v37
  %621 = vmatprep.subr.mxu0 0.0
  %622 = vmatpush1.msra.mxu0 %v38
  %623 = vmatprep.subr.mxu0 0.0
  %624 = vmatpush1.msra.mxu0 0.0
  %625 = vmatprep.subr.mxu0 0.0
  %626 = vmatpush1.msra.mxu0 0.0
  %627 = vmatprep.subr.mxu0 0.0
  %628 = vmatpush1.msra.mxu0 0.0
  %629 = vmatprep.subr.mxu0 0.0
  %630 = vmatpush1.msra.mxu0 0.0
  %631 = vmatprep.subr.mxu0 0.0
  %632 = vmatpush1.msra.mxu0 0.0
  %633 = vmatprep.subr.mxu0 0.0
  %634 = vmatpush1.msra.mxu0 0.0
  %635 = vmatprep.subr.mxu0 0.0
  %636 = vmatpush1.msra.mxu0 0.0
  %637 = vmatprep.subr.mxu0 0.0
  %638 = vmatpush1.msra.mxu0 0.0
  %639 = vmatprep.subr.mxu0 0.0
  %640 = vmatpush1.msra.mxu0 0.0
  %641 = vmatprep.subr.mxu0 0.0
  %642 = vmatpush1.msra.mxu0 0.0
  %643 = vmatprep.subr.mxu0 0.0
  %644 = vmatpush1.msra.mxu0 0.0
  %645 = vmatprep.subr.mxu0 0.0
  %646 = vmatpush1.msra.mxu0 0.0
  %647 = vmatprep.subr.mxu0 0.0
  %648 = vmatpush1.msra.mxu0 0.0
  %649 = vmatprep.subr.mxu0 0.0
  %650 = vmatpush1.msra.mxu0 0.0
  %651 = vmatprep.subr.mxu0 0.0
  %652 = vmatpush1.msra.mxu0 0.0
  %653 = vmatprep.subr.mxu0 0.0
  %654 = vmatpush1.msra.mxu0 0.0
  %655 = vmatprep.subr.mxu0 0.0
  %656 = vmatpush1.msra.mxu0 0.0
  %657 = vmatprep.subr.mxu0 0.0
  %658 = vmatpush1.msra.mxu0 0.0
  %659 = vmatprep.subr.mxu0 0.0
  %660 = vmatpush1.msra.mxu0 0.0
  %661 = vmatprep.subr.mxu0 0.0
  %662 = vmatpush1.msra.mxu0 0.0
  %663 = vmatprep.subr.mxu0 0.0
  %664 = vmatpush1.msra.mxu0 0.0
  %665 = vmatprep.subr.mxu0 0.0
  %666 = vmatpush1.msra.mxu0 0.0
  %667 = vmatprep.subr.mxu0 0.0
  %668 = vmatpush1.msra.mxu0 0.0
  %669 = vmatprep.subr.mxu0 0.0
  %670 = vmatpush1.msra.mxu0 0.0
  %671 = vmatprep.subr.mxu0 0.0
  %672 = vmatpush1.msra.mxu0 0.0
  %673 = vmatprep.subr.mxu0 0.0
  %674 = vmatpush1.msra.mxu0 0.0
  %675 = vmatprep.subr.mxu0 0.0
  %676 = vmatpush1.msra.mxu0 0.0
  %677 = vmatprep.subr.mxu0 0.0
  %678 = vmatpush1.msra.mxu0 0.0
  %679 = vmatprep.mubr.f32.mxu0 0.0
  %680 = vmatmul.mubr.f32.gmra.mrb[0].mxu0 %v441
  %v681 = vpop.f32.mrb[0].mxu0
  %v682 = vadd.f32 0.0, %v681
  %v683 = vpop.f32.mrb[0].mxu0
  %684 = vdwg.mxu0
  %v685 = vadd.f32 %v614, %v682
  %v686 = vxor.u32 %v685, 2147483648
  %v687 = vmul.f32 %v686, 1.442695
  %v688 = vpow.pop %v687
  %v689 = vadd.f32 %v688, 1.0
  %v690 = vrcp.pop %v689
  %v691 = vmul.f32 1.0, %v690
  %v692 = vtanh.pop %v685
  %v693 = vmul.f32 %v691, %v431
  %695 = vrot.lane.b32.xlu0 %v692, 64
  %v696 = vpop.permute.xlu0 %695
  %v698 = vmul.f32 %v691, %v696
  %700 = vrot.lane.b32.xlu0 %v698, 32
  %v701 = vpop.permute.xlu0 %700
  %v703 = vadd.f32 %v693, %v701
  %v704 = vtanh.pop %v703
  %706 = vrot.lane.b32.xlu0 %v704, 64
  %v707 = vpop.permute.xlu0 %706
  %v709 = vmul.f32 %v691, %v707
  %711 = vrot.lane.b32.xlu0 %v709, 32
  %v712 = vpop.permute.xlu0 %711
  %v713 = vsel %vm61, %v712, 0
  %715 = vmatprep.subr.mxu0 0.0
  %716 = vmatpush1.msra.mxu0 %v39
  %717 = vmatprep.subr.mxu0 0.0
  %718 = vmatpush1.msra.mxu0 %v40
  %719 = vmatprep.subr.mxu0 0.0
  %720 = vmatpush1.msra.mxu0 %v41
  %721 = vmatprep.subr.mxu0 0.0
  %722 = vmatpush1.msra.mxu0 %v42
  %723 = vmatprep.subr.mxu0 0.0
  %724 = vmatpush1.msra.mxu0 0.0
  %725 = vmatprep.subr.mxu0 0.0
  %726 = vmatpush1.msra.mxu0 0.0
  %727 = vmatprep.subr.mxu0 0.0
  %728 = vmatpush1.msra.mxu0 0.0
  %729 = vmatprep.subr.mxu0 0.0
  %730 = vmatpush1.msra.mxu0 0.0
  %731 = vmatprep.subr.mxu0 0.0
  %732 = vmatpush1.msra.mxu0 0.0
  %733 = vmatprep.subr.mxu0 0.0
  %734 = vmatpush1.msra.mxu0 0.0
  %735 = vmatprep.subr.mxu0 0.0
  %736 = vmatpush1.msra.mxu0 0.0
  %737 = vmatprep.subr.mxu0 0.0
  %738 = vmatpush1.msra.mxu0 0.0
  %739 = vmatprep.subr.mxu0 0.0
  %740 = vmatpush1.msra.mxu0 0.0
  %741 = vmatprep.subr.mxu0 0.0
  %742 = vmatpush1.msra.mxu0 0.0
  %743 = vmatprep.subr.mxu0 0.0
  %744 = vmatpush1.msra.mxu0 0.0
  %745 = vmatprep.subr.mxu0 0.0
  %746 = vmatpush1.msra.mxu0 0.0
  %747 = vmatprep.subr.mxu0 0.0
  %748 = vmatpush1.msra.mxu0 0.0
  %749 = vmatprep.subr.mxu0 0.0
  %750 = vmatpush1.msra.mxu0 0.0
  %751 = vmatprep.subr.mxu0 0.0
  %752 = vmatpush1.msra.mxu0 0.0
  %753 = vmatprep.subr.mxu0 0.0
  %754 = vmatpush1.msra.mxu0 0.0
  %755 = vmatprep.subr.mxu0 0.0
  %756 = vmatpush1.msra.mxu0 0.0
  %757 = vmatprep.subr.mxu0 0.0
  %758 = vmatpush1.msra.mxu0 0.0
  %759 = vmatprep.subr.mxu0 0.0
  %760 = vmatpush1.msra.mxu0 0.0
  %761 = vmatprep.subr.mxu0 0.0
  %762 = vmatpush1.msra.mxu0 0.0
  %763 = vmatprep.subr.mxu0 0.0
  %764 = vmatpush1.msra.mxu0 0.0
  %765 = vmatprep.subr.mxu0 0.0
  %766 = vmatpush1.msra.mxu0 0.0
  %767 = vmatprep.subr.mxu0 0.0
  %768 = vmatpush1.msra.mxu0 0.0
  %769 = vmatprep.subr.mxu0 0.0
  %770 = vmatpush1.msra.mxu0 0.0
  %771 = vmatprep.subr.mxu0 0.0
  %772 = vmatpush1.msra.mxu0 0.0
  %773 = vmatprep.subr.mxu0 0.0
  %774 = vmatpush1.msra.mxu0 0.0
  %775 = vmatprep.subr.mxu0 0.0
  %776 = vmatpush1.msra.mxu0 0.0
  %777 = vmatprep.subr.mxu0 0.0
  %778 = vmatpush1.msra.mxu0 0.0
  %779 = vmatprep.mubr.f32.mxu0 0.0
  %780 = vmatmul.mubr.f32.gmra.mrb[0].mxu0 %v713
  %v781 = vpop.f32.mrb[0].mxu0
  %v782 = vadd.f32 0.0, %v781
  %v783 = vpop.f32.mrb[0].mxu0
  %784 = vdwg.mxu0
  %786 = vrot.lane.b32.xlu0 %v612, 32
  %v787 = vpop.permute.xlu0 %786
  %v788 = vsel %vm61, %v787, 0
  %790 = vmatprep.subr.mxu0 0.0
  %791 = vmatpush1.msra.mxu0 %v43
  %792 = vmatprep.subr.mxu0 0.0
  %793 = vmatpush1.msra.mxu0 %v44
  %794 = vmatprep.subr.mxu0 0.0
  %795 = vmatpush1.msra.mxu0 %v45
  %796 = vmatprep.subr.mxu0 0.0
  %797 = vmatpush1.msra.mxu0 %v46
  %798 = vmatprep.subr.mxu0 0.0
  %799 = vmatpush1.msra.mxu0 0.0
  %800 = vmatprep.subr.mxu0 0.0
  %801 = vmatpush1.msra.mxu0 0.0
  %802 = vmatprep.subr.mxu0 0.0
  %803 = vmatpush1.msra.mxu0 0.0
  %804 = vmatprep.subr.mxu0 0.0
  %805 = vmatpush1.msra.mxu0 0.0
  %806 = vmatprep.subr.mxu0 0.0
  %807 = vmatpush1.msra.mxu0 0.0
  %808 = vmatprep.subr.mxu0 0.0
  %809 = vmatpush1.msra.mxu0 0.0
  %810 = vmatprep.subr.mxu0 0.0
  %811 = vmatpush1.msra.mxu0 0.0
  %812 = vmatprep.subr.mxu0 0.0
  %813 = vmatpush1.msra.mxu0 0.0
  %814 = vmatprep.subr.mxu0 0.0
  %815 = vmatpush1.msra.mxu0 0.0
  %816 = vmatprep.subr.mxu0 0.0
  %817 = vmatpush1.msra.mxu0 0.0
  %818 = vmatprep.subr.mxu0 0.0
  %819 = vmatpush1.msra.mxu0 0.0
  %820 = vmatprep.subr.mxu0 0.0
  %821 = vmatpush1.msra.mxu0 0.0
  %822 = vmatprep.subr.mxu0 0.0
  %823 = vmatpush1.msra.mxu0 0.0
  %824 = vmatprep.subr.mxu0 0.0
  %825 = vmatpush1.msra.mxu0 0.0
  %826 = vmatprep.subr.mxu0 0.0
  %827 = vmatpush1.msra.mxu0 0.0
  %828 = vmatprep.subr.mxu0 0.0
  %829 = vmatpush1.msra.mxu0 0.0
  %830 = vmatprep.subr.mxu0 0.0
  %831 = vmatpush1.msra.mxu0 0.0
  %832 = vmatprep.subr.mxu0 0.0
  %833 = vmatpush1.msra.mxu0 0.0
  %834 = vmatprep.subr.mxu0 0.0
  %835 = vmatpush1.msra.mxu0 0.0
  %836 = vmatprep.subr.mxu0 0.0
  %837 = vmatpush1.msra.mxu0 0.0
  %838 = vmatprep.subr.mxu0 0.0
  %839 = vmatpush1.msra.mxu0 0.0
  %840 = vmatprep.subr.mxu0 0.0
  %841 = vmatpush1.msra.mxu0 0.0
  %842 = vmatprep.subr.mxu0 0.0
  %843 = vmatpush1.msra.mxu0 0.0
  %844 = vmatprep.subr.mxu0 0.0
  %845 = vmatpush1.msra.mxu0 0.0
  %846 = vmatprep.subr.mxu0 0.0
  %847 = vmatpush1.msra.mxu0 0.0
  %848 = vmatprep.subr.mxu0 0.0
  %849 = vmatpush1.msra.mxu0 0.0
  %850 = vmatprep.subr.mxu0 0.0
  %851 = vmatpush1.msra.mxu0 0.0
  %852 = vmatprep.subr.mxu0 0.0
  %853 = vmatpush1.msra.mxu0 0.0
  %854 = vmatprep.mubr.f32.mxu0 0.0
  %855 = vmatmul.mubr.f32.gmra.mrb[0].mxu0 %v788
  %v856 = vpop.f32.mrb[0].mxu0
  %v857 = vadd.f32 %v782, %v856
  %v858 = vpop.f32.mrb[0].mxu0
  %859 = vdwg.mxu0
  %v860 = vadd.f32 %v857, %v52
  %v861 = vxor.u32 %v860, 2147483648
  %v862 = vmul.f32 %v861, 1.442695
  %v863 = vpow.pop %v862
  %v864 = vadd.f32 %v863, 1.0
  %v865 = vrcp.pop %v864
  %v866 = vmul.f32 1.0, %v865
  %v867 = vtanh.pop %v860
  %v868 = vmul.f32 %v866, %v606
  %870 = vrot.lane.b32.xlu0 %v867, 64
  %v871 = vpop.permute.xlu0 %870
  %v873 = vmul.f32 %v866, %v871
  %875 = vrot.lane.b32.xlu0 %v873, 32
  %v876 = vpop.permute.xlu0 %875
  %v878 = vadd.f32 %v868, %v876
  %v879 = vtanh.pop %v878
  %881 = vrot.lane.b32.xlu0 %v879, 64
  %v882 = vpop.permute.xlu0 %881
  %v884 = vmul.f32 %v866, %v882
  %s885 = scalar_lea.vmem %s0, 24
  %v886 = vld [vmem:[%s885] sm:$0xff]
  %887 = vmatprep.subr.mxu0 0.0
  %888 = vmatpush1.msra.mxu0 %v35
  %889 = vmatprep.subr.mxu0 0.0
  %890 = vmatpush1.msra.mxu0 %v36
  %891 = vmatprep.subr.mxu0 0.0
  %892 = vmatpush1.msra.mxu0 %v37
  %893 = vmatprep.subr.mxu0 0.0
  %894 = vmatpush1.msra.mxu0 %v38
  %895 = vmatprep.subr.mxu0 0.0
  %896 = vmatpush1.msra.mxu0 0.0
  %897 = vmatprep.subr.mxu0 0.0
  %898 = vmatpush1.msra.mxu0 0.0
  %899 = vmatprep.subr.mxu0 0.0
  %900 = vmatpush1.msra.mxu0 0.0
  %901 = vmatprep.subr.mxu0 0.0
  %902 = vmatpush1.msra.mxu0 0.0
  %903 = vmatprep.subr.mxu0 0.0
  %904 = vmatpush1.msra.mxu0 0.0
  %905 = vmatprep.subr.mxu0 0.0
  %906 = vmatpush1.msra.mxu0 0.0
  %907 = vmatprep.subr.mxu0 0.0
  %908 = vmatpush1.msra.mxu0 0.0
  %909 = vmatprep.subr.mxu0 0.0
  %910 = vmatpush1.msra.mxu0 0.0
  %911 = vmatprep.subr.mxu0 0.0
  %912 = vmatpush1.msra.mxu0 0.0
  %913 = vmatprep.subr.mxu0 0.0
  %914 = vmatpush1.msra.mxu0 0.0
  %915 = vmatprep.subr.mxu0 0.0
  %916 = vmatpush1.msra.mxu0 0.0
  %917 = vmatprep.subr.mxu0 0.0
  %918 = vmatpush1.msra.mxu0 0.0
  %919 = vmatprep.subr.mxu0 0.0
  %920 = vmatpush1.msra.mxu0 0.0
  %921 = vmatprep.subr.mxu0 0.0
  %922 = vmatpush1.msra.mxu0 0.0
  %923 = vmatprep.subr.mxu0 0.0
  %924 = vmatpush1.msra.mxu0 0.0
  %925 = vmatprep.subr.mxu0 0.0
  %926 = vmatpush1.msra.mxu0 0.0
  %927 = vmatprep.subr.mxu0 0.0
  %928 = vmatpush1.msra.mxu0 0.0
  %929 = vmatprep.subr.mxu0 0.0
  %930 = vmatpush1.msra.mxu0 0.0
  %931 = vmatprep.subr.mxu0 0.0
  %932 = vmatpush1.msra.mxu0 0.0
  %933 = vmatprep.subr.mxu0 0.0
  %934 = vmatpush1.msra.mxu0 0.0
  %935 = vmatprep.subr.mxu0 0.0
  %936 = vmatpush1.msra.mxu0 0.0
  %937 = vmatprep.subr.mxu0 0.0
  %938 = vmatpush1.msra.mxu0 0.0
  %939 = vmatprep.subr.mxu0 0.0
  %940 = vmatpush1.msra.mxu0 0.0
  %941 = vmatprep.subr.mxu0 0.0
  %942 = vmatpush1.msra.mxu0 0.0
  %943 = vmatprep.subr.mxu0 0.0
  %944 = vmatpush1.msra.mxu0 0.0
  %945 = vmatprep.subr.mxu0 0.0
  %946 = vmatpush1.msra.mxu0 0.0
  %947 = vmatprep.subr.mxu0 0.0
  %948 = vmatpush1.msra.mxu0 0.0
  %949 = vmatprep.subr.mxu0 0.0
  %950 = vmatpush1.msra.mxu0 0.0
  %951 = vmatprep.mubr.f32.mxu0 0.0
  %952 = vmatmul.mubr.f32.gmra.mrb[0].mxu0 %v713
  %v953 = vpop.f32.mrb[0].mxu0
  %v954 = vadd.f32 0.0, %v953
  %v955 = vpop.f32.mrb[0].mxu0
  %956 = vdwg.mxu0
  %v957 = vadd.f32 %v886, %v954
  %v958 = vxor.u32 %v957, 2147483648
  %v959 = vmul.f32 %v958, 1.442695
  %v960 = vpow.pop %v959
  %v961 = vadd.f32 %v960, 1.0
  %v962 = vrcp.pop %v961
  %v963 = vmul.f32 1.0, %v962
  %v964 = vtanh.pop %v957
  %v965 = vmul.f32 %v963, %v703
  %967 = vrot.lane.b32.xlu0 %v964, 64
  %v968 = vpop.permute.xlu0 %967
  %v970 = vmul.f32 %v963, %v968
  %972 = vrot.lane.b32.xlu0 %v970, 32
  %v973 = vpop.permute.xlu0 %972
  %v975 = vadd.f32 %v965, %v973
  %v976 = vtanh.pop %v975
  %978 = vrot.lane.b32.xlu0 %v976, 64
  %v979 = vpop.permute.xlu0 %978
  %v981 = vmul.f32 %v963, %v979
  %983 = vrot.lane.b32.xlu0 %v981, 32
  %v984 = vpop.permute.xlu0 %983
  %v985 = vsel %vm61, %v984, 0
  %987 = vmatprep.subr.mxu0 0.0
  %988 = vmatpush1.msra.mxu0 %v39
  %989 = vmatprep.subr.mxu0 0.0
  %990 = vmatpush1.msra.mxu0 %v40
  %991 = vmatprep.subr.mxu0 0.0
  %992 = vmatpush1.msra.mxu0 %v41
  %993 = vmatprep.subr.mxu0 0.0
  %994 = vmatpush1.msra.mxu0 %v42
  %995 = vmatprep.subr.mxu0 0.0
  %996 = vmatpush1.msra.mxu0 0.0
  %997 = vmatprep.subr.mxu0 0.0
  %998 = vmatpush1.msra.mxu0 0.0
  %999 = vmatprep.subr.mxu0 0.0
  %1000 = vmatpush1.msra.mxu0 0.0
  %1001 = vmatprep.subr.mxu0 0.0
  %1002 = vmatpush1.msra.mxu0 0.0
  %1003 = vmatprep.subr.mxu0 0.0
  %1004 = vmatpush1.msra.mxu0 0.0
  %1005 = vmatprep.subr.mxu0 0.0
  %1006 = vmatpush1.msra.mxu0 0.0
  %1007 = vmatprep.subr.mxu0 0.0
  %1008 = vmatpush1.msra.mxu0 0.0
  %1009 = vmatprep.subr.mxu0 0.0
  %1010 = vmatpush1.msra.mxu0 0.0
  %1011 = vmatprep.subr.mxu0 0.0
  %1012 = vmatpush1.msra.mxu0 0.0
  %1013 = vmatprep.subr.mxu0 0.0
  %1014 = vmatpush1.msra.mxu0 0.0
  %1015 = vmatprep.subr.mxu0 0.0
  %1016 = vmatpush1.msra.mxu0 0.0
  %1017 = vmatprep.subr.mxu0 0.0
  %1018 = vmatpush1.msra.mxu0 0.0
  %1019 = vmatprep.subr.mxu0 0.0
  %1020 = vmatpush1.msra.mxu0 0.0
  %1021 = vmatprep.subr.mxu0 0.0
  %1022 = vmatpush1.msra.mxu0 0.0
  %1023 = vmatprep.subr.mxu0 0.0
  %1024 = vmatpush1.msra.mxu0 0.0
  %1025 = vmatprep.subr.mxu0 0.0
  %1026 = vmatpush1.msra.mxu0 0.0
  %1027 = vmatprep.subr.mxu0 0.0
  %1028 = vmatpush1.msra.mxu0 0.0
  %1029 = vmatprep.subr.mxu0 0.0
  %1030 = vmatpush1.msra.mxu0 0.0
  %1031 = vmatprep.subr.mxu0 0.0
  %1032 = vmatpush1.msra.mxu0 0.0
  %1033 = vmatprep.subr.mxu0 0.0
  %1034 = vmatpush1.msra.mxu0 0.0
  %1035 = vmatprep.subr.mxu0 0.0
  %1036 = vmatpush1.msra.mxu0 0.0
  %1037 = vmatprep.subr.mxu0 0.0
  %1038 = vmatpush1.msra.mxu0 0.0
  %1039 = vmatprep.subr.mxu0 0.0
  %1040 = vmatpush1.msra.mxu0 0.0
  %1041 = vmatprep.subr.mxu0 0.0
  %1042 = vmatpush1.msra.mxu0 0.0
  %1043 = vmatprep.subr.mxu0 0.0
  %1044 = vmatpush1.msra.mxu0 0.0
  %1045 = vmatprep.subr.mxu0 0.0
  %1046 = vmatpush1.msra.mxu0 0.0
  %1047 = vmatprep.subr.mxu0 0.0
  %1048 = vmatpush1.msra.mxu0 0.0
  %1049 = vmatprep.subr.mxu0 0.0
  %1050 = vmatpush1.msra.mxu0 0.0
  %1051 = vmatprep.mubr.f32.mxu0 0.0
  %1052 = vmatmul.mubr.f32.gmra.mrb[0].mxu0 %v985
  %v1053 = vpop.f32.mrb[0].mxu0
  %v1054 = vadd.f32 0.0, %v1053
  %v1055 = vpop.f32.mrb[0].mxu0
  %1056 = vdwg.mxu0
  %1058 = vrot.lane.b32.xlu0 %v884, 32
  %v1059 = vpop.permute.xlu0 %1058
  %v1060 = vsel %vm61, %v1059, 0
  %1062 = vmatprep.subr.mxu0 0.0
  %1063 = vmatpush1.msra.mxu0 %v43
  %1064 = vmatprep.subr.mxu0 0.0
  %1065 = vmatpush1.msra.mxu0 %v44
  %1066 = vmatprep.subr.mxu0 0.0
  %1067 = vmatpush1.msra.mxu0 %v45
  %1068 = vmatprep.subr.mxu0 0.0
  %1069 = vmatpush1.msra.mxu0 %v46
  %1070 = vmatprep.subr.mxu0 0.0
  %1071 = vmatpush1.msra.mxu0 0.0
  %1072 = vmatprep.subr.mxu0 0.0
  %1073 = vmatpush1.msra.mxu0 0.0
  %1074 = vmatprep.subr.mxu0 0.0
  %1075 = vmatpush1.msra.mxu0 0.0
  %1076 = vmatprep.subr.mxu0 0.0
  %1077 = vmatpush1.msra.mxu0 0.0
  %1078 = vmatprep.subr.mxu0 0.0
  %1079 = vmatpush1.msra.mxu0 0.0
  %1080 = vmatprep.subr.mxu0 0.0
  %1081 = vmatpush1.msra.mxu0 0.0
  %1082 = vmatprep.subr.mxu0 0.0
  %1083 = vmatpush1.msra.mxu0 0.0
  %1084 = vmatprep.subr.mxu0 0.0
  %1085 = vmatpush1.msra.mxu0 0.0
  %1086 = vmatprep.subr.mxu0 0.0
  %1087 = vmatpush1.msra.mxu0 0.0
  %1088 = vmatprep.subr.mxu0 0.0
  %1089 = vmatpush1.msra.mxu0 0.0
  %1090 = vmatprep.subr.mxu0 0.0
  %1091 = vmatpush1.msra.mxu0 0.0
  %1092 = vmatprep.subr.mxu0 0.0
  %1093 = vmatpush1.msra.mxu0 0.0
  %1094 = vmatprep.subr.mxu0 0.0
  %1095 = vmatpush1.msra.mxu0 0.0
  %1096 = vmatprep.subr.mxu0 0.0
  %1097 = vmatpush1.msra.mxu0 0.0
  %1098 = vmatprep.subr.mxu0 0.0
  %1099 = vmatpush1.msra.mxu0 0.0
  %1100 = vmatprep.subr.mxu0 0.0
  %1101 = vmatpush1.msra.mxu0 0.0
  %1102 = vmatprep.subr.mxu0 0.0
  %1103 = vmatpush1.msra.mxu0 0.0
  %1104 = vmatprep.subr.mxu0 0.0
  %1105 = vmatpush1.msra.mxu0 0.0
  %1106 = vmatprep.subr.mxu0 0.0
  %1107 = vmatpush1.msra.mxu0 0.0
  %1108 = vmatprep.subr.mxu0 0.0
  %1109 = vmatpush1.msra.mxu0 0.0
  %1110 = vmatprep.subr.mxu0 0.0
  %1111 = vmatpush1.msra.mxu0 0.0
  %1112 = vmatprep.subr.mxu0 0.0
  %1113 = vmatpush1.msra.mxu0 0.0
  %1114 = vmatprep.subr.mxu0 0.0
  %1115 = vmatpush1.msra.mxu0 0.0
  %1116 = vmatprep.subr.mxu0 0.0
  %1117 = vmatpush1.msra.mxu0 0.0
  %1118 = vmatprep.subr.mxu0 0.0
  %1119 = vmatpush1.msra.mxu0 0.0
  %1120 = vmatprep.subr.mxu0 0.0
  %1121 = vmatpush1.msra.mxu0 0.0
  %1122 = vmatprep.subr.mxu0 0.0
  %1123 = vmatpush1.msra.mxu0 0.0
  %1124 = vmatprep.subr.mxu0 0.0
  %1125 = vmatpush1.msra.mxu0 0.0
  %1126 = vmatprep.mubr.f32.mxu0 0.0
  %1127 = vmatmul.mubr.f32.gmra.mrb[0].mxu0 %v1060
  %v1128 = vpop.f32.mrb[0].mxu0
  %v1129 = vadd.f32 %v1054, %v1128
  %v1130 = vpop.f32.mrb[0].mxu0
  %1131 = vdwg.mxu0
  %v1132 = vadd.f32 %v1129, %v52
  %v1133 = vxor.u32 %v1132, 2147483648
  %v1134 = vmul.f32 %v1133, 1.442695
  %v1135 = vpow.pop %v1134
  %v1136 = vadd.f32 %v1135, 1.0
  %v1137 = vrcp.pop %v1136
  %v1138 = vmul.f32 1.0, %v1137
  %v1139 = vtanh.pop %v1132
  %v1140 = vmul.f32 %v1138, %v878
  %1142 = vrot.lane.b32.xlu0 %v1139, 64
  %v1143 = vpop.permute.xlu0 %1142
  %v1145 = vmul.f32 %v1138, %v1143
  %1147 = vrot.lane.b32.xlu0 %v1145, 32
  %v1148 = vpop.permute.xlu0 %1147
  %v1150 = vadd.f32 %v1140, %v1148
  %v1151 = vtanh.pop %v1150
  %1153 = vrot.lane.b32.xlu0 %v1151, 64
  %v1154 = vpop.permute.xlu0 %1153
  %v1156 = vmul.f32 %v1138, %v1154
  %s1157 = scalar_lea.vmem %s0, 32
  %v1158 = vld [vmem:[%s1157] sm:$0xff]
  %1159 = vmatprep.subr.mxu0 0.0
  %1160 = vmatpush1.msra.mxu0 %v35
  %1161 = vmatprep.subr.mxu0 0.0
  %1162 = vmatpush1.msra.mxu0 %v36
  %1163 = vmatprep.subr.mxu0 0.0
  %1164 = vmatpush1.msra.mxu0 %v37
  %1165 = vmatprep.subr.mxu0 0.0
  %1166 = vmatpush1.msra.mxu0 %v38
  %1167 = vmatprep.subr.mxu0 0.0
  %1168 = vmatpush1.msra.mxu0 0.0
  %1169 = vmatprep.subr.mxu0 0.0
  %1170 = vmatpush1.msra.mxu0 0.0
  %1171 = vmatprep.subr.mxu0 0.0
  %1172 = vmatpush1.msra.mxu0 0.0
  %1173 = vmatprep.subr.mxu0 0.0
  %1174 = vmatpush1.msra.mxu0 0.0
  %1175 = vmatprep.subr.mxu0 0.0
  %1176 = vmatpush1.msra.mxu0 0.0
  %1177 = vmatprep.subr.mxu0 0.0
  %1178 = vmatpush1.msra.mxu0 0.0
  %1179 = vmatprep.subr.mxu0 0.0
  %1180 = vmatpush1.msra.mxu0 0.0
  %1181 = vmatprep.subr.mxu0 0.0
  %1182 = vmatpush1.msra.mxu0 0.0
  %1183 = vmatprep.subr.mxu0 0.0
  %1184 = vmatpush1.msra.mxu0 0.0
  %1185 = vmatprep.subr.mxu0 0.0
  %1186 = vmatpush1.msra.mxu0 0.0
  %1187 = vmatprep.subr.mxu0 0.0
  %1188 = vmatpush1.msra.mxu0 0.0
  %1189 = vmatprep.subr.mxu0 0.0
  %1190 = vmatpush1.msra.mxu0 0.0
  %1191 = vmatprep.subr.mxu0 0.0
  %1192 = vmatpush1.msra.mxu0 0.0
  %1193 = vmatprep.subr.mxu0 0.0
  %1194 = vmatpush1.msra.mxu0 0.0
  %1195 = vmatprep.subr.mxu0 0.0
  %1196 = vmatpush1.msra.mxu0 0.0
  %1197 = vmatprep.subr.mxu0 0.0
  %1198 = vmatpush1.msra.mxu0 0.0
  %1199 = vmatprep.subr.mxu0 0.0
  %1200 = vmatpush1.msra.mxu0 0.0
  %1201 = vmatprep.subr.mxu0 0.0
  %1202 = vmatpush1.msra.mxu0 0.0
  %1203 = vmatprep.subr.mxu0 0.0
  %1204 = vmatpush1.msra.mxu0 0.0
  %1205 = vmatprep.subr.mxu0 0.0
  %1206 = vmatpush1.msra.mxu0 0.0
  %1207 = vmatprep.subr.mxu0 0.0
  %1208 = vmatpush1.msra.mxu0 0.0
  %1209 = vmatprep.subr.mxu0 0.0
  %1210 = vmatpush1.msra.mxu0 0.0
  %1211 = vmatprep.subr.mxu0 0.0
  %1212 = vmatpush1.msra.mxu0 0.0
  %1213 = vmatprep.subr.mxu0 0.0
  %1214 = vmatpush1.msra.mxu0 0.0
  %1215 = vmatprep.subr.mxu0 0.0
  %1216 = vmatpush1.msra.mxu0 0.0
  %1217 = vmatprep.subr.mxu0 0.0
  %1218 = vmatpush1.msra.mxu0 0.0
  %1219 = vmatprep.subr.mxu0 0.0
  %1220 = vmatpush1.msra.mxu0 0.0
  %1221 = vmatprep.subr.mxu0 0.0
  %1222 = vmatpush1.msra.mxu0 0.0
  %1223 = vmatprep.mubr.f32.mxu0 0.0
  %1224 = vmatmul.mubr.f32.gmra.mrb[0].mxu0 %v985
  %v1225 = vpop.f32.mrb[0].mxu0
  %v1226 = vadd.f32 0.0, %v1225
  %v1227 = vpop.f32.mrb[0].mxu0
  %1228 = vdwg.mxu0
  %v1229 = vadd.f32 %v1158, %v1226
  %v1230 = vxor.u32 %v1229, 2147483648
  %v1231 = vmul.f32 %v1230, 1.442695
  %v1232 = vpow.pop %v1231
  %v1233 = vadd.f32 %v1232, 1.0
  %v1234 = vrcp.pop %v1233
  %v1235 = vmul.f32 1.0, %v1234
  %v1236 = vtanh.pop %v1229
  %v1237 = vmul.f32 %v1235, %v975
  %1239 = vrot.lane.b32.xlu0 %v1236, 64
  %v1240 = vpop.permute.xlu0 %1239
  %v1242 = vmul.f32 %v1235, %v1240
  %1244 = vrot.lane.b32.xlu0 %v1242, 32
  %v1245 = vpop.permute.xlu0 %1244
  %v1247 = vadd.f32 %v1237, %v1245
  %v1248 = vtanh.pop %v1247
  %1250 = vrot.lane.b32.xlu0 %v1248, 64
  %v1251 = vpop.permute.xlu0 %1250
  %v1253 = vmul.f32 %v1235, %v1251
  %1255 = vrot.lane.b32.xlu0 %v1253, 32
  %v1256 = vpop.permute.xlu0 %1255
  %v1257 = vsel %vm61, %v1256, 0
  %1259 = vmatprep.subr.mxu0 0.0
  %1260 = vmatpush1.msra.mxu0 %v39
  %1261 = vmatprep.subr.mxu0 0.0
  %1262 = vmatpush1.msra.mxu0 %v40
  %1263 = vmatprep.subr.mxu0 0.0
  %1264 = vmatpush1.msra.mxu0 %v41
  %1265 = vmatprep.subr.mxu0 0.0
  %1266 = vmatpush1.msra.mxu0 %v42
  %1267 = vmatprep.subr.mxu0 0.0
  %1268 = vmatpush1.msra.mxu0 0.0
  %1269 = vmatprep.subr.mxu0 0.0
  %1270 = vmatpush1.msra.mxu0 0.0
  %1271 = vmatprep.subr.mxu0 0.0
  %1272 = vmatpush1.msra.mxu0 0.0
  %1273 = vmatprep.subr.mxu0 0.0
  %1274 = vmatpush1.msra.mxu0 0.0
  %1275 = vmatprep.subr.mxu0 0.0
  %1276 = vmatpush1.msra.mxu0 0.0
  %1277 = vmatprep.subr.mxu0 0.0
  %1278 = vmatpush1.msra.mxu0 0.0
  %1279 = vmatprep.subr.mxu0 0.0
  %1280 = vmatpush1.msra.mxu0 0.0
  %1281 = vmatprep.subr.mxu0 0.0
  %1282 = vmatpush1.msra.mxu0 0.0
  %1283 = vmatprep.subr.mxu0 0.0
  %1284 = vmatpush1.msra.mxu0 0.0
  %1285 = vmatprep.subr.mxu0 0.0
  %1286 = vmatpush1.msra.mxu0 0.0
  %1287 = vmatprep.subr.mxu0 0.0
  %1288 = vmatpush1.msra.mxu0 0.0
  %1289 = vmatprep.subr.mxu0 0.0
  %1290 = vmatpush1.msra.mxu0 0.0
  %1291 = vmatprep.subr.mxu0 0.0
  %1292 = vmatpush1.msra.mxu0 0.0
  %1293 = vmatprep.subr.mxu0 0.0
  %1294 = vmatpush1.msra.mxu0 0.0
  %1295 = vmatprep.subr.mxu0 0.0
  %1296 = vmatpush1.msra.mxu0 0.0
  %1297 = vmatprep.subr.mxu0 0.0
  %1298 = vmatpush1.msra.mxu0 0.0
  %1299 = vmatprep.subr.mxu0 0.0
  %1300 = vmatpush1.msra.mxu0 0.0
  %1301 = vmatprep.subr.mxu0 0.0
  %1302 = vmatpush1.msra.mxu0 0.0
  %1303 = vmatprep.subr.mxu0 0.0
  %1304 = vmatpush1.msra.mxu0 0.0
  %1305 = vmatprep.subr.mxu0 0.0
  %1306 = vmatpush1.msra.mxu0 0.0
  %1307 = vmatprep.subr.mxu0 0.0
  %1308 = vmatpush1.msra.mxu0 0.0
  %1309 = vmatprep.subr.mxu0 0.0
  %1310 = vmatpush1.msra.mxu0 0.0
  %1311 = vmatprep.subr.mxu0 0.0
  %1312 = vmatpush1.msra.mxu0 0.0
  %1313 = vmatprep.subr.mxu0 0.0
  %1314 = vmatpush1.msra.mxu0 0.0
  %1315 = vmatprep.subr.mxu0 0.0
  %1316 = vmatpush1.msra.mxu0 0.0
  %1317 = vmatprep.subr.mxu0 0.0
  %1318 = vmatpush1.msra.mxu0 0.0
  %1319 = vmatprep.subr.mxu0 0.0
  %1320 = vmatpush1.msra.mxu0 0.0
  %1321 = vmatprep.subr.mxu0 0.0
  %1322 = vmatpush1.msra.mxu0 0.0
  %1323 = vmatprep.mubr.f32.mxu0 0.0
  %1324 = vmatmul.mubr.f32.gmra.mrb[0].mxu0 %v1257
  %v1325 = vpop.f32.mrb[0].mxu0
  %v1326 = vadd.f32 0.0, %v1325
  %v1327 = vpop.f32.mrb[0].mxu0
  %1328 = vdwg.mxu0
  %1330 = vrot.lane.b32.xlu0 %v1156, 32
  %v1331 = vpop.permute.xlu0 %1330
  %v1332 = vsel %vm61, %v1331, 0
  %1334 = vmatprep.subr.mxu0 0.0
  %1335 = vmatpush1.msra.mxu0 %v43
  %1336 = vmatprep.subr.mxu0 0.0
  %1337 = vmatpush1.msra.mxu0 %v44
  %1338 = vmatprep.subr.mxu0 0.0
  %1339 = vmatpush1.msra.mxu0 %v45
  %1340 = vmatprep.subr.mxu0 0.0
  %1341 = vmatpush1.msra.mxu0 %v46
  %1342 = vmatprep.subr.mxu0 0.0
  %1343 = vmatpush1.msra.mxu0 0.0
  %1344 = vmatprep.subr.mxu0 0.0
  %1345 = vmatpush1.msra.mxu0 0.0
  %1346 = vmatprep.subr.mxu0 0.0
  %1347 = vmatpush1.msra.mxu0 0.0
  %1348 = vmatprep.subr.mxu0 0.0
  %1349 = vmatpush1.msra.mxu0 0.0
  %1350 = vmatprep.subr.mxu0 0.0
  %1351 = vmatpush1.msra.mxu0 0.0
  %1352 = vmatprep.subr.mxu0 0.0
  %1353 = vmatpush1.msra.mxu0 0.0
  %1354 = vmatprep.subr.mxu0 0.0
  %1355 = vmatpush1.msra.mxu0 0.0
  %1356 = vmatprep.subr.mxu0 0.0
  %1357 = vmatpush1.msra.mxu0 0.0
  %1358 = vmatprep.subr.mxu0 0.0
  %1359 = vmatpush1.msra.mxu0 0.0
  %1360 = vmatprep.subr.mxu0 0.0
  %1361 = vmatpush1.msra.mxu0 0.0
  %1362 = vmatprep.subr.mxu0 0.0
  %1363 = vmatpush1.msra.mxu0 0.0
  %1364 = vmatprep.subr.mxu0 0.0
  %1365 = vmatpush1.msra.mxu0 0.0
  %1366 = vmatprep.subr.mxu0 0.0
  %1367 = vmatpush1.msra.mxu0 0.0
  %1368 = vmatprep.subr.mxu0 0.0
  %1369 = vmatpush1.msra.mxu0 0.0
  %1370 = vmatprep.subr.mxu0 0.0
  %1371 = vmatpush1.msra.mxu0 0.0
  %1372 = vmatprep.subr.mxu0 0.0
  %1373 = vmatpush1.msra.mxu0 0.0
  %1374 = vmatprep.subr.mxu0 0.0
  %1375 = vmatpush1.msra.mxu0 0.0
  %1376 = vmatprep.subr.mxu0 0.0
  %1377 = vmatpush1.msra.mxu0 0.0
  %1378 = vmatprep.subr.mxu0 0.0
  %1379 = vmatpush1.msra.mxu0 0.0
  %1380 = vmatprep.subr.mxu0 0.0
  %1381 = vmatpush1.msra.mxu0 0.0
  %1382 = vmatprep.subr.mxu0 0.0
  %1383 = vmatpush1.msra.mxu0 0.0
  %1384 = vmatprep.subr.mxu0 0.0
  %1385 = vmatpush1.msra.mxu0 0.0
  %1386 = vmatprep.subr.mxu0 0.0
  %1387 = vmatpush1.msra.mxu0 0.0
  %1388 = vmatprep.subr.mxu0 0.0
  %1389 = vmatpush1.msra.mxu0 0.0
  %1390 = vmatprep.subr.mxu0 0.0
  %1391 = vmatpush1.msra.mxu0 0.0
  %1392 = vmatprep.subr.mxu0 0.0
  %1393 = vmatpush1.msra.mxu0 0.0
  %1394 = vmatprep.subr.mxu0 0.0
  %1395 = vmatpush1.msra.mxu0 0.0
  %1396 = vmatprep.subr.mxu0 0.0
  %1397 = vmatpush1.msra.mxu0 0.0
  %1398 = vmatprep.mubr.f32.mxu0 0.0
  %1399 = vmatmul.mubr.f32.gmra.mrb[0].mxu0 %v1332
  %v1400 = vpop.f32.mrb[0].mxu0
  %v1401 = vadd.f32 %v1326, %v1400
  %v1402 = vpop.f32.mrb[0].mxu0
  %1403 = vdwg.mxu0
  %v1404 = vadd.f32 %v1401, %v52
  %v1405 = vxor.u32 %v1404, 2147483648
  %v1406 = vmul.f32 %v1405, 1.442695
  %v1407 = vpow.pop %v1406
  %v1408 = vadd.f32 %v1407, 1.0
  %v1409 = vrcp.pop %v1408
  %v1410 = vmul.f32 1.0, %v1409
  %v1411 = vtanh.pop %v1404
  %v1412 = vmul.f32 %v1410, %v1150
  %1414 = vrot.lane.b32.xlu0 %v1411, 64
  %v1415 = vpop.permute.xlu0 %1414
  %v1417 = vmul.f32 %v1410, %v1415
  %1419 = vrot.lane.b32.xlu0 %v1417, 32
  %v1420 = vpop.permute.xlu0 %1419
  %v1422 = vadd.f32 %v1412, %v1420
  %v1423 = vtanh.pop %v1422
  %1425 = vrot.lane.b32.xlu0 %v1423, 64
  %v1426 = vpop.permute.xlu0 %1425
  %v1428 = vmul.f32 %v1410, %v1426
  %s1429 = scalar_lea.vmem %s0, 40
  %v1430 = vld [vmem:[%s1429] sm:$0xff]
  %1431 = vmatprep.subr.mxu0 0.0
  %1432 = vmatpush1.msra.mxu0 %v35
  %1433 = vmatprep.subr.mxu0 0.0
  %1434 = vmatpush1.msra.mxu0 %v36
  %1435 = vmatprep.subr.mxu0 0.0
  %1436 = vmatpush1.msra.mxu0 %v37
  %1437 = vmatprep.subr.mxu0 0.0
  %1438 = vmatpush1.msra.mxu0 %v38
  %1439 = vmatprep.subr.mxu0 0.0
  %1440 = vmatpush1.msra.mxu0 0.0
  %1441 = vmatprep.subr.mxu0 0.0
  %1442 = vmatpush1.msra.mxu0 0.0
  %1443 = vmatprep.subr.mxu0 0.0
  %1444 = vmatpush1.msra.mxu0 0.0
  %1445 = vmatprep.subr.mxu0 0.0
  %1446 = vmatpush1.msra.mxu0 0.0
  %1447 = vmatprep.subr.mxu0 0.0
  %1448 = vmatpush1.msra.mxu0 0.0
  %1449 = vmatprep.subr.mxu0 0.0
  %1450 = vmatpush1.msra.mxu0 0.0
  %1451 = vmatprep.subr.mxu0 0.0
  %1452 = vmatpush1.msra.mxu0 0.0
  %1453 = vmatprep.subr.mxu0 0.0
  %1454 = vmatpush1.msra.mxu0 0.0
  %1455 = vmatprep.subr.mxu0 0.0
  %1456 = vmatpush1.msra.mxu0 0.0
  %1457 = vmatprep.subr.mxu0 0.0
  %1458 = vmatpush1.msra.mxu0 0.0
  %1459 = vmatprep.subr.mxu0 0.0
  %1460 = vmatpush1.msra.mxu0 0.0
  %1461 = vmatprep.subr.mxu0 0.0
  %1462 = vmatpush1.msra.mxu0 0.0
  %1463 = vmatprep.subr.mxu0 0.0
  %1464 = vmatpush1.msra.mxu0 0.0
  %1465 = vmatprep.subr.mxu0 0.0
  %1466 = vmatpush1.msra.mxu0 0.0
  %1467 = vmatprep.subr.mxu0 0.0
  %1468 = vmatpush1.msra.mxu0 0.0
  %1469 = vmatprep.subr.mxu0 0.0
  %1470 = vmatpush1.msra.mxu0 0.0
  %1471 = vmatprep.subr.mxu0 0.0
  %1472 = vmatpush1.msra.mxu0 0.0
  %1473 = vmatprep.subr.mxu0 0.0
  %1474 = vmatpush1.msra.mxu0 0.0
  %1475 = vmatprep.subr.mxu0 0.0
  %1476 = vmatpush1.msra.mxu0 0.0
  %1477 = vmatprep.subr.mxu0 0.0
  %1478 = vmatpush1.msra.mxu0 0.0
  %1479 = vmatprep.subr.mxu0 0.0
  %1480 = vmatpush1.msra.mxu0 0.0
  %1481 = vmatprep.subr.mxu0 0.0
  %1482 = vmatpush1.msra.mxu0 0.0
  %1483 = vmatprep.subr.mxu0 0.0
  %1484 = vmatpush1.msra.mxu0 0.0
  %1485 = vmatprep.subr.mxu0 0.0
  %1486 = vmatpush1.msra.mxu0 0.0
  %1487 = vmatprep.subr.mxu0 0.0
  %1488 = vmatpush1.msra.mxu0 0.0
  %1489 = vmatprep.subr.mxu0 0.0
  %1490 = vmatpush1.msra.mxu0 0.0
  %1491 = vmatprep.subr.mxu0 0.0
  %1492 = vmatpush1.msra.mxu0 0.0
  %1493 = vmatprep.subr.mxu0 0.0
  %1494 = vmatpush1.msra.mxu0 0.0
  %1495 = vmatprep.mubr.f32.mxu0 0.0
  %1496 = vmatmul.mubr.f32.gmra.mrb[0].mxu0 %v1257
  %v1497 = vpop.f32.mrb[0].mxu0
  %v1498 = vadd.f32 0.0, %v1497
  %v1499 = vpop.f32.mrb[0].mxu0
  %1500 = vdwg.mxu0
  %v1501 = vadd.f32 %v1430, %v1498
  %v1502 = vxor.u32 %v1501, 2147483648
  %v1503 = vmul.f32 %v1502, 1.442695
  %v1504 = vpow.pop %v1503
  %v1505 = vadd.f32 %v1504, 1.0
  %v1506 = vrcp.pop %v1505
  %v1507 = vmul.f32 1.0, %v1506
  %v1508 = vtanh.pop %v1501
  %v1509 = vmul.f32 %v1507, %v1247
  %1511 = vrot.lane.b32.xlu0 %v1508, 64
  %v1512 = vpop.permute.xlu0 %1511
  %v1514 = vmul.f32 %v1507, %v1512
  %1516 = vrot.lane.b32.xlu0 %v1514, 32
  %v1517 = vpop.permute.xlu0 %1516
  %v1519 = vadd.f32 %v1509, %v1517
  %v1520 = vtanh.pop %v1519
  %1522 = vrot.lane.b32.xlu0 %v1520, 64
  %v1523 = vpop.permute.xlu0 %1522
  %v1525 = vmul.f32 %v1507, %v1523
  %1527 = vrot.lane.b32.xlu0 %v1525, 32
  %v1528 = vpop.permute.xlu0 %1527
  %v1529 = vsel %vm61, %v1528, 0
  %1531 = vmatprep.subr.mxu0 0.0
  %1532 = vmatpush1.msra.mxu0 %v39
  %1533 = vmatprep.subr.mxu0 0.0
  %1534 = vmatpush1.msra.mxu0 %v40
  %1535 = vmatprep.subr.mxu0 0.0
  %1536 = vmatpush1.msra.mxu0 %v41
  %1537 = vmatprep.subr.mxu0 0.0
  %1538 = vmatpush1.msra.mxu0 %v42
  %1539 = vmatprep.subr.mxu0 0.0
  %1540 = vmatpush1.msra.mxu0 0.0
  %1541 = vmatprep.subr.mxu0 0.0
  %1542 = vmatpush1.msra.mxu0 0.0
  %1543 = vmatprep.subr.mxu0 0.0
  %1544 = vmatpush1.msra.mxu0 0.0
  %1545 = vmatprep.subr.mxu0 0.0
  %1546 = vmatpush1.msra.mxu0 0.0
  %1547 = vmatprep.subr.mxu0 0.0
  %1548 = vmatpush1.msra.mxu0 0.0
  %1549 = vmatprep.subr.mxu0 0.0
  %1550 = vmatpush1.msra.mxu0 0.0
  %1551 = vmatprep.subr.mxu0 0.0
  %1552 = vmatpush1.msra.mxu0 0.0
  %1553 = vmatprep.subr.mxu0 0.0
  %1554 = vmatpush1.msra.mxu0 0.0
  %1555 = vmatprep.subr.mxu0 0.0
  %1556 = vmatpush1.msra.mxu0 0.0
  %1557 = vmatprep.subr.mxu0 0.0
  %1558 = vmatpush1.msra.mxu0 0.0
  %1559 = vmatprep.subr.mxu0 0.0
  %1560 = vmatpush1.msra.mxu0 0.0
  %1561 = vmatprep.subr.mxu0 0.0
  %1562 = vmatpush1.msra.mxu0 0.0
  %1563 = vmatprep.subr.mxu0 0.0
  %1564 = vmatpush1.msra.mxu0 0.0
  %1565 = vmatprep.subr.mxu0 0.0
  %1566 = vmatpush1.msra.mxu0 0.0
  %1567 = vmatprep.subr.mxu0 0.0
  %1568 = vmatpush1.msra.mxu0 0.0
  %1569 = vmatprep.subr.mxu0 0.0
  %1570 = vmatpush1.msra.mxu0 0.0
  %1571 = vmatprep.subr.mxu0 0.0
  %1572 = vmatpush1.msra.mxu0 0.0
  %1573 = vmatprep.subr.mxu0 0.0
  %1574 = vmatpush1.msra.mxu0 0.0
  %1575 = vmatprep.subr.mxu0 0.0
  %1576 = vmatpush1.msra.mxu0 0.0
  %1577 = vmatprep.subr.mxu0 0.0
  %1578 = vmatpush1.msra.mxu0 0.0
  %1579 = vmatprep.subr.mxu0 0.0
  %1580 = vmatpush1.msra.mxu0 0.0
  %1581 = vmatprep.subr.mxu0 0.0
  %1582 = vmatpush1.msra.mxu0 0.0
  %1583 = vmatprep.subr.mxu0 0.0
  %1584 = vmatpush1.msra.mxu0 0.0
  %1585 = vmatprep.subr.mxu0 0.0
  %1586 = vmatpush1.msra.mxu0 0.0
  %1587 = vmatprep.subr.mxu0 0.0
  %1588 = vmatpush1.msra.mxu0 0.0
  %1589 = vmatprep.subr.mxu0 0.0
  %1590 = vmatpush1.msra.mxu0 0.0
  %1591 = vmatprep.subr.mxu0 0.0
  %1592 = vmatpush1.msra.mxu0 0.0
  %1593 = vmatprep.subr.mxu0 0.0
  %1594 = vmatpush1.msra.mxu0 0.0
  %1595 = vmatprep.mubr.f32.mxu0 0.0
  %1596 = vmatmul.mubr.f32.gmra.mrb[0].mxu0 %v1529
  %v1597 = vpop.f32.mrb[0].mxu0
  %v1598 = vadd.f32 0.0, %v1597
  %v1599 = vpop.f32.mrb[0].mxu0
  %1600 = vdwg.mxu0
  %1602 = vrot.lane.b32.xlu0 %v1428, 32
  %v1603 = vpop.permute.xlu0 %1602
  %v1604 = vsel %vm61, %v1603, 0
  %1606 = vmatprep.subr.mxu0 0.0
  %1607 = vmatpush1.msra.mxu0 %v43
  %1608 = vmatprep.subr.mxu0 0.0
  %1609 = vmatpush1.msra.mxu0 %v44
  %1610 = vmatprep.subr.mxu0 0.0
  %1611 = vmatpush1.msra.mxu0 %v45
  %1612 = vmatprep.subr.mxu0 0.0
  %1613 = vmatpush1.msra.mxu0 %v46
  %1614 = vmatprep.subr.mxu0 0.0
  %1615 = vmatpush1.msra.mxu0 0.0
  %1616 = vmatprep.subr.mxu0 0.0
  %1617 = vmatpush1.msra.mxu0 0.0
  %1618 = vmatprep.subr.mxu0 0.0
  %1619 = vmatpush1.msra.mxu0 0.0
  %1620 = vmatprep.subr.mxu0 0.0
  %1621 = vmatpush1.msra.mxu0 0.0
  %1622 = vmatprep.subr.mxu0 0.0
  %1623 = vmatpush1.msra.mxu0 0.0
  %1624 = vmatprep.subr.mxu0 0.0
  %1625 = vmatpush1.msra.mxu0 0.0
  %1626 = vmatprep.subr.mxu0 0.0
  %1627 = vmatpush1.msra.mxu0 0.0
  %1628 = vmatprep.subr.mxu0 0.0
  %1629 = vmatpush1.msra.mxu0 0.0
  %1630 = vmatprep.subr.mxu0 0.0
  %1631 = vmatpush1.msra.mxu0 0.0
  %1632 = vmatprep.subr.mxu0 0.0
  %1633 = vmatpush1.msra.mxu0 0.0
  %1634 = vmatprep.subr.mxu0 0.0
  %1635 = vmatpush1.msra.mxu0 0.0
  %1636 = vmatprep.subr.mxu0 0.0
  %1637 = vmatpush1.msra.mxu0 0.0
  %1638 = vmatprep.subr.mxu0 0.0
  %1639 = vmatpush1.msra.mxu0 0.0
  %1640 = vmatprep.subr.mxu0 0.0
  %1641 = vmatpush1.msra.mxu0 0.0
  %1642 = vmatprep.subr.mxu0 0.0
  %1643 = vmatpush1.msra.mxu0 0.0
  %1644 = vmatprep.subr.mxu0 0.0
  %1645 = vmatpush1.msra.mxu0 0.0
  %1646 = vmatprep.subr.mxu0 0.0
  %1647 = vmatpush1.msra.mxu0 0.0
  %1648 = vmatprep.subr.mxu0 0.0
  %1649 = vmatpush1.msra.mxu0 0.0
  %1650 = vmatprep.subr.mxu0 0.0
  %1651 = vmatpush1.msra.mxu0 0.0
  %1652 = vmatprep.subr.mxu0 0.0
  %1653 = vmatpush1.msra.mxu0 0.0
  %1654 = vmatprep.subr.mxu0 0.0
  %1655 = vmatpush1.msra.mxu0 0.0
  %1656 = vmatprep.subr.mxu0 0.0
  %1657 = vmatpush1.msra.mxu0 0.0
  %1658 = vmatprep.subr.mxu0 0.0
  %1659 = vmatpush1.msra.mxu0 0.0
  %1660 = vmatprep.subr.mxu0 0.0
  %1661 = vmatpush1.msra.mxu0 0.0
  %1662 = vmatprep.subr.mxu0 0.0
  %1663 = vmatpush1.msra.mxu0 0.0
  %1664 = vmatprep.subr.mxu0 0.0
  %1665 = vmatpush1.msra.mxu0 0.0
  %1666 = vmatprep.subr.mxu0 0.0
  %1667 = vmatpush1.msra.mxu0 0.0
  %1668 = vmatprep.subr.mxu0 0.0
  %1669 = vmatpush1.msra.mxu0 0.0
  %1670 = vmatprep.mubr.f32.mxu0 0.0
  %1671 = vmatmul.mubr.f32.gmra.mrb[0].mxu0 %v1604
  %v1672 = vpop.f32.mrb[0].mxu0
  %v1673 = vadd.f32 %v1598, %v1672
  %v1674 = vpop.f32.mrb[0].mxu0
  %1675 = vdwg.mxu0
  %v1676 = vadd.f32 %v1673, %v52
  %v1677 = vxor.u32 %v1676, 2147483648
  %v1678 = vmul.f32 %v1677, 1.442695
  %v1679 = vpow.pop %v1678
  %v1680 = vadd.f32 %v1679, 1.0
  %v1681 = vrcp.pop %v1680
  %v1682 = vmul.f32 1.0, %v1681
  %v1683 = vtanh.pop %v1676
  %v1684 = vmul.f32 %v1682, %v1422
  %1686 = vrot.lane.b32.xlu0 %v1683, 64
  %v1687 = vpop.permute.xlu0 %1686
  %v1689 = vmul.f32 %v1682, %v1687
  %1691 = vrot.lane.b32.xlu0 %v1689, 32
  %v1692 = vpop.permute.xlu0 %1691
  %v1694 = vadd.f32 %v1684, %v1692
  %v1695 = vtanh.pop %v1694
  %1697 = vrot.lane.b32.xlu0 %v1695, 64
  %v1698 = vpop.permute.xlu0 %1697
  %v1700 = vmul.f32 %v1682, %v1698
  %s1701 = scalar_lea.vmem %s0, 48
  %v1702 = vld [vmem:[%s1701] sm:$0xff]
  %1703 = vmatprep.subr.mxu0 0.0
  %1704 = vmatpush1.msra.mxu0 %v35
  %1705 = vmatprep.subr.mxu0 0.0
  %1706 = vmatpush1.msra.mxu0 %v36
  %1707 = vmatprep.subr.mxu0 0.0
  %1708 = vmatpush1.msra.mxu0 %v37
  %1709 = vmatprep.subr.mxu0 0.0
  %1710 = vmatpush1.msra.mxu0 %v38
  %1711 = vmatprep.subr.mxu0 0.0
  %1712 = vmatpush1.msra.mxu0 0.0
  %1713 = vmatprep.subr.mxu0 0.0
  %1714 = vmatpush1.msra.mxu0 0.0
  %1715 = vmatprep.subr.mxu0 0.0
  %1716 = vmatpush1.msra.mxu0 0.0
  %1717 = vmatprep.subr.mxu0 0.0
  %1718 = vmatpush1.msra.mxu0 0.0
  %1719 = vmatprep.subr.mxu0 0.0
  %1720 = vmatpush1.msra.mxu0 0.0
  %1721 = vmatprep.subr.mxu0 0.0
  %1722 = vmatpush1.msra.mxu0 0.0
  %1723 = vmatprep.subr.mxu0 0.0
  %1724 = vmatpush1.msra.mxu0 0.0
  %1725 = vmatprep.subr.mxu0 0.0
  %1726 = vmatpush1.msra.mxu0 0.0
  %1727 = vmatprep.subr.mxu0 0.0
  %1728 = vmatpush1.msra.mxu0 0.0
  %1729 = vmatprep.subr.mxu0 0.0
  %1730 = vmatpush1.msra.mxu0 0.0
  %1731 = vmatprep.subr.mxu0 0.0
  %1732 = vmatpush1.msra.mxu0 0.0
  %1733 = vmatprep.subr.mxu0 0.0
  %1734 = vmatpush1.msra.mxu0 0.0
  %1735 = vmatprep.subr.mxu0 0.0
  %1736 = vmatpush1.msra.mxu0 0.0
  %1737 = vmatprep.subr.mxu0 0.0
  %1738 = vmatpush1.msra.mxu0 0.0
  %1739 = vmatprep.subr.mxu0 0.0
  %1740 = vmatpush1.msra.mxu0 0.0
  %1741 = vmatprep.subr.mxu0 0.0
  %1742 = vmatpush1.msra.mxu0 0.0
  %1743 = vmatprep.subr.mxu0 0.0
  %1744 = vmatpush1.msra.mxu0 0.0
  %1745 = vmatprep.subr.mxu0 0.0
  %1746 = vmatpush1.msra.mxu0 0.0
  %1747 = vmatprep.subr.mxu0 0.0
  %1748 = vmatpush1.msra.mxu0 0.0
  %1749 = vmatprep.subr.mxu0 0.0
  %1750 = vmatpush1.msra.mxu0 0.0
  %1751 = vmatprep.subr.mxu0 0.0
  %1752 = vmatpush1.msra.mxu0 0.0
  %1753 = vmatprep.subr.mxu0 0.0
  %1754 = vmatpush1.msra.mxu0 0.0
  %1755 = vmatprep.subr.mxu0 0.0
  %1756 = vmatpush1.msra.mxu0 0.0
  %1757 = vmatprep.subr.mxu0 0.0
  %1758 = vmatpush1.msra.mxu0 0.0
  %1759 = vmatprep.subr.mxu0 0.0
  %1760 = vmatpush1.msra.mxu0 0.0
  %1761 = vmatprep.subr.mxu0 0.0
  %1762 = vmatpush1.msra.mxu0 0.0
  %1763 = vmatprep.subr.mxu0 0.0
  %1764 = vmatpush1.msra.mxu0 0.0
  %1765 = vmatprep.subr.mxu0 0.0
  %1766 = vmatpush1.msra.mxu0 0.0
  %1767 = vmatprep.mubr.f32.mxu0 0.0
  %1768 = vmatmul.mubr.f32.gmra.mrb[0].mxu0 %v1529
  %v1769 = vpop.f32.mrb[0].mxu0
  %v1770 = vadd.f32 0.0, %v1769
  %v1771 = vpop.f32.mrb[0].mxu0
  %1772 = vdwg.mxu0
  %v1773 = vadd.f32 %v1702, %v1770
  %v1774 = vxor.u32 %v1773, 2147483648
  %v1775 = vmul.f32 %v1774, 1.442695
  %v1776 = vpow.pop %v1775
  %v1777 = vadd.f32 %v1776, 1.0
  %v1778 = vrcp.pop %v1777
  %v1779 = vmul.f32 1.0, %v1778
  %v1780 = vtanh.pop %v1773
  %v1781 = vmul.f32 %v1779, %v1519
  %1783 = vrot.lane.b32.xlu0 %v1780, 64
  %v1784 = vpop.permute.xlu0 %1783
  %v1786 = vmul.f32 %v1779, %v1784
  %1788 = vrot.lane.b32.xlu0 %v1786, 32
  %v1789 = vpop.permute.xlu0 %1788
  %v1791 = vadd.f32 %v1781, %v1789
  %v1792 = vtanh.pop %v1791
  %1794 = vrot.lane.b32.xlu0 %v1792, 64
  %v1795 = vpop.permute.xlu0 %1794
  %v1797 = vmul.f32 %v1779, %v1795
  %1799 = vrot.lane.b32.xlu0 %v1797, 32
  %v1800 = vpop.permute.xlu0 %1799
  %v1801 = vsel %vm61, %v1800, 0
  %1803 = vmatprep.subr.mxu0 0.0
  %1804 = vmatpush1.msra.mxu0 %v39
  %1805 = vmatprep.subr.mxu0 0.0
  %1806 = vmatpush1.msra.mxu0 %v40
  %1807 = vmatprep.subr.mxu0 0.0
  %1808 = vmatpush1.msra.mxu0 %v41
  %1809 = vmatprep.subr.mxu0 0.0
  %1810 = vmatpush1.msra.mxu0 %v42
  %1811 = vmatprep.subr.mxu0 0.0
  %1812 = vmatpush1.msra.mxu0 0.0
  %1813 = vmatprep.subr.mxu0 0.0
  %1814 = vmatpush1.msra.mxu0 0.0
  %1815 = vmatprep.subr.mxu0 0.0
  %1816 = vmatpush1.msra.mxu0 0.0
  %1817 = vmatprep.subr.mxu0 0.0
  %1818 = vmatpush1.msra.mxu0 0.0
  %1819 = vmatprep.subr.mxu0 0.0
  %1820 = vmatpush1.msra.mxu0 0.0
  %1821 = vmatprep.subr.mxu0 0.0
  %1822 = vmatpush1.msra.mxu0 0.0
  %1823 = vmatprep.subr.mxu0 0.0
  %1824 = vmatpush1.msra.mxu0 0.0
  %1825 = vmatprep.subr.mxu0 0.0
  %1826 = vmatpush1.msra.mxu0 0.0
  %1827 = vmatprep.subr.mxu0 0.0
  %1828 = vmatpush1.msra.mxu0 0.0
  %1829 = vmatprep.subr.mxu0 0.0
  %1830 = vmatpush1.msra.mxu0 0.0
  %1831 = vmatprep.subr.mxu0 0.0
  %1832 = vmatpush1.msra.mxu0 0.0
  %1833 = vmatprep.subr.mxu0 0.0
  %1834 = vmatpush1.msra.mxu0 0.0
  %1835 = vmatprep.subr.mxu0 0.0
  %1836 = vmatpush1.msra.mxu0 0.0
  %1837 = vmatprep.subr.mxu0 0.0
  %1838 = vmatpush1.msra.mxu0 0.0
  %1839 = vmatprep.subr.mxu0 0.0
  %1840 = vmatpush1.msra.mxu0 0.0
  %1841 = vmatprep.subr.mxu0 0.0
  %1842 = vmatpush1.msra.mxu0 0.0
  %1843 = vmatprep.subr.mxu0 0.0
  %1844 = vmatpush1.msra.mxu0 0.0
  %1845 = vmatprep.subr.mxu0 0.0
  %1846 = vmatpush1.msra.mxu0 0.0
  %1847 = vmatprep.subr.mxu0 0.0
  %1848 = vmatpush1.msra.mxu0 0.0
  %1849 = vmatprep.subr.mxu0 0.0
  %1850 = vmatpush1.msra.mxu0 0.0
  %1851 = vmatprep.subr.mxu0 0.0
  %1852 = vmatpush1.msra.mxu0 0.0
  %1853 = vmatprep.subr.mxu0 0.0
  %1854 = vmatpush1.msra.mxu0 0.0
  %1855 = vmatprep.subr.mxu0 0.0
  %1856 = vmatpush1.msra.mxu0 0.0
  %1857 = vmatprep.subr.mxu0 0.0
  %1858 = vmatpush1.msra.mxu0 0.0
  %1859 = vmatprep.subr.mxu0 0.0
  %1860 = vmatpush1.msra.mxu0 0.0
  %1861 = vmatprep.subr.mxu0 0.0
  %1862 = vmatpush1.msra.mxu0 0.0
  %1863 = vmatprep.subr.mxu0 0.0
  %1864 = vmatpush1.msra.mxu0 0.0
  %1865 = vmatprep.subr.mxu0 0.0
  %1866 = vmatpush1.msra.mxu0 0.0
  %1867 = vmatprep.mubr.f32.mxu0 0.0
  %1868 = vmatmul.mubr.f32.gmra.mrb[0].mxu0 %v1801
  %v1869 = vpop.f32.mrb[0].mxu0
  %v1870 = vadd.f32 0.0, %v1869
  %v1871 = vpop.f32.mrb[0].mxu0
  %1872 = vdwg.mxu0
  %1874 = vrot.lane.b32.xlu0 %v1700, 32
  %v1875 = vpop.permute.xlu0 %1874
  %v1876 = vsel %vm61, %v1875, 0
  %1878 = vmatprep.subr.mxu0 0.0
  %1879 = vmatpush1.msra.mxu0 %v43
  %1880 = vmatprep.subr.mxu0 0.0
  %1881 = vmatpush1.msra.mxu0 %v44
  %1882 = vmatprep.subr.mxu0 0.0
  %1883 = vmatpush1.msra.mxu0 %v45
  %1884 = vmatprep.subr.mxu0 0.0
  %1885 = vmatpush1.msra.mxu0 %v46
  %1886 = vmatprep.subr.mxu0 0.0
  %1887 = vmatpush1.msra.mxu0 0.0
  %1888 = vmatprep.subr.mxu0 0.0
  %1889 = vmatpush1.msra.mxu0 0.0
  %1890 = vmatprep.subr.mxu0 0.0
  %1891 = vmatpush1.msra.mxu0 0.0
  %1892 = vmatprep.subr.mxu0 0.0
  %1893 = vmatpush1.msra.mxu0 0.0
  %1894 = vmatprep.subr.mxu0 0.0
  %1895 = vmatpush1.msra.mxu0 0.0
  %1896 = vmatprep.subr.mxu0 0.0
  %1897 = vmatpush1.msra.mxu0 0.0
  %1898 = vmatprep.subr.mxu0 0.0
  %1899 = vmatpush1.msra.mxu0 0.0
  %1900 = vmatprep.subr.mxu0 0.0
  %1901 = vmatpush1.msra.mxu0 0.0
  %1902 = vmatprep.subr.mxu0 0.0
  %1903 = vmatpush1.msra.mxu0 0.0
  %1904 = vmatprep.subr.mxu0 0.0
  %1905 = vmatpush1.msra.mxu0 0.0
  %1906 = vmatprep.subr.mxu0 0.0
  %1907 = vmatpush1.msra.mxu0 0.0
  %1908 = vmatprep.subr.mxu0 0.0
  %1909 = vmatpush1.msra.mxu0 0.0
  %1910 = vmatprep.subr.mxu0 0.0
  %1911 = vmatpush1.msra.mxu0 0.0
  %1912 = vmatprep.subr.mxu0 0.0
  %1913 = vmatpush1.msra.mxu0 0.0
  %1914 = vmatprep.subr.mxu0 0.0
  %1915 = vmatpush1.msra.mxu0 0.0
  %1916 = vmatprep.subr.mxu0 0.0
  %1917 = vmatpush1.msra.mxu0 0.0
  %1918 = vmatprep.subr.mxu0 0.0
  %1919 = vmatpush1.msra.mxu0 0.0
  %1920 = vmatprep.subr.mxu0 0.0
  %1921 = vmatpush1.msra.mxu0 0.0
  %1922 = vmatprep.subr.mxu0 0.0
  %1923 = vmatpush1.msra.mxu0 0.0
  %1924 = vmatprep.subr.mxu0 0.0
  %1925 = vmatpush1.msra.mxu0 0.0
  %1926 = vmatprep.subr.mxu0 0.0
  %1927 = vmatpush1.msra.mxu0 0.0
  %1928 = vmatprep.subr.mxu0 0.0
  %1929 = vmatpush1.msra.mxu0 0.0
  %1930 = vmatprep.subr.mxu0 0.0
  %1931 = vmatpush1.msra.mxu0 0.0
  %1932 = vmatprep.subr.mxu0 0.0
  %1933 = vmatpush1.msra.mxu0 0.0
  %1934 = vmatprep.subr.mxu0 0.0
  %1935 = vmatpush1.msra.mxu0 0.0
  %1936 = vmatprep.subr.mxu0 0.0
  %1937 = vmatpush1.msra.mxu0 0.0
  %1938 = vmatprep.subr.mxu0 0.0
  %1939 = vmatpush1.msra.mxu0 0.0
  %1940 = vmatprep.subr.mxu0 0.0
  %1941 = vmatpush1.msra.mxu0 0.0
  %1942 = vmatprep.mubr.f32.mxu0 0.0
  %1943 = vmatmul.mubr.f32.gmra.mrb[0].mxu0 %v1876
  %v1944 = vpop.f32.mrb[0].mxu0
  %v1945 = vadd.f32 %v1870, %v1944
  %v1946 = vpop.f32.mrb[0].mxu0
  %1947 = vdwg.mxu0
  %v1948 = vadd.f32 %v1945, %v52
  %v1949 = vxor.u32 %v1948, 2147483648
  %v1950 = vmul.f32 %v1949, 1.442695
  %v1951 = vpow.pop %v1950
  %v1952 = vadd.f32 %v1951, 1.0
  %v1953 = vrcp.pop %v1952
  %v1954 = vmul.f32 1.0, %v1953
  %v1955 = vtanh.pop %v1948
  %v1956 = vmul.f32 %v1954, %v1694
  %1958 = vrot.lane.b32.xlu0 %v1955, 64
  %v1959 = vpop.permute.xlu0 %1958
  %v1961 = vmul.f32 %v1954, %v1959
  %1963 = vrot.lane.b32.xlu0 %v1961, 32
  %v1964 = vpop.permute.xlu0 %1963
  %v1966 = vadd.f32 %v1956, %v1964
  %v1967 = vtanh.pop %v1966
  %1969 = vrot.lane.b32.xlu0 %v1967, 64
  %v1970 = vpop.permute.xlu0 %1969
  %v1972 = vmul.f32 %v1954, %v1970
  %s1973 = scalar_lea.vmem %s0, 56
  %v1974 = vld [vmem:[%s1973] sm:$0xff]
  %1975 = vmatprep.subr.mxu0 0.0
  %1976 = vmatpush1.msra.mxu0 %v35
  %1977 = vmatprep.subr.mxu0 0.0
  %1978 = vmatpush1.msra.mxu0 %v36
  %1979 = vmatprep.subr.mxu0 0.0
  %1980 = vmatpush1.msra.mxu0 %v37
  %1981 = vmatprep.subr.mxu0 0.0
  %1982 = vmatpush1.msra.mxu0 %v38
  %1983 = vmatprep.subr.mxu0 0.0
  %1984 = vmatpush1.msra.mxu0 0.0
  %1985 = vmatprep.subr.mxu0 0.0
  %1986 = vmatpush1.msra.mxu0 0.0
  %1987 = vmatprep.subr.mxu0 0.0
  %1988 = vmatpush1.msra.mxu0 0.0
  %1989 = vmatprep.subr.mxu0 0.0
  %1990 = vmatpush1.msra.mxu0 0.0
  %1991 = vmatprep.subr.mxu0 0.0
  %1992 = vmatpush1.msra.mxu0 0.0
  %1993 = vmatprep.subr.mxu0 0.0
  %1994 = vmatpush1.msra.mxu0 0.0
  %1995 = vmatprep.subr.mxu0 0.0
  %1996 = vmatpush1.msra.mxu0 0.0
  %1997 = vmatprep.subr.mxu0 0.0
  %1998 = vmatpush1.msra.mxu0 0.0
  %1999 = vmatprep.subr.mxu0 0.0
  %2000 = vmatpush1.msra.mxu0 0.0
  %2001 = vmatprep.subr.mxu0 0.0
  %2002 = vmatpush1.msra.mxu0 0.0
  %2003 = vmatprep.subr.mxu0 0.0
  %2004 = vmatpush1.msra.mxu0 0.0
  %2005 = vmatprep.subr.mxu0 0.0
  %2006 = vmatpush1.msra.mxu0 0.0
  %2007 = vmatprep.subr.mxu0 0.0
  %2008 = vmatpush1.msra.mxu0 0.0
  %2009 = vmatprep.subr.mxu0 0.0
  %2010 = vmatpush1.msra.mxu0 0.0
  %2011 = vmatprep.subr.mxu0 0.0
  %2012 = vmatpush1.msra.mxu0 0.0
  %2013 = vmatprep.subr.mxu0 0.0
  %2014 = vmatpush1.msra.mxu0 0.0
  %2015 = vmatprep.subr.mxu0 0.0
  %2016 = vmatpush1.msra.mxu0 0.0
  %2017 = vmatprep.subr.mxu0 0.0
  %2018 = vmatpush1.msra.mxu0 0.0
  %2019 = vmatprep.subr.mxu0 0.0
  %2020 = vmatpush1.msra.mxu0 0.0
  %2021 = vmatprep.subr.mxu0 0.0
  %2022 = vmatpush1.msra.mxu0 0.0
  %2023 = vmatprep.subr.mxu0 0.0
  %2024 = vmatpush1.msra.mxu0 0.0
  %2025 = vmatprep.subr.mxu0 0.0
  %2026 = vmatpush1.msra.mxu0 0.0
  %2027 = vmatprep.subr.mxu0 0.0
  %2028 = vmatpush1.msra.mxu0 0.0
  %2029 = vmatprep.subr.mxu0 0.0
  %2030 = vmatpush1.msra.mxu0 0.0
  %2031 = vmatprep.subr.mxu0 0.0
  %2032 = vmatpush1.msra.mxu0 0.0
  %2033 = vmatprep.subr.mxu0 0.0
  %2034 = vmatpush1.msra.mxu0 0.0
  %2035 = vmatprep.subr.mxu0 0.0
  %2036 = vmatpush1.msra.mxu0 0.0
  %2037 = vmatprep.subr.mxu0 0.0
  %2038 = vmatpush1.msra.mxu0 0.0
  %2039 = vmatprep.mubr.f32.mxu0 0.0
  %2040 = vmatmul.mubr.f32.gmra.mrb[0].mxu0 %v1801
  %v2041 = vpop.f32.mrb[0].mxu0
  %v2042 = vadd.f32 0.0, %v2041
  %v2043 = vpop.f32.mrb[0].mxu0
  %2044 = vdwg.mxu0
  %v2045 = vadd.f32 %v1974, %v2042
  %v2046 = vxor.u32 %v2045, 2147483648
  %v2047 = vmul.f32 %v2046, 1.442695
  %v2048 = vpow.pop %v2047
  %v2049 = vadd.f32 %v2048, 1.0
  %v2050 = vrcp.pop %v2049
  %v2051 = vmul.f32 1.0, %v2050
  %v2052 = vtanh.pop %v2045
  %v2053 = vmul.f32 %v2051, %v1791
  %2055 = vrot.lane.b32.xlu0 %v2052, 64
  %v2056 = vpop.permute.xlu0 %2055
  %v2058 = vmul.f32 %v2051, %v2056
  %2060 = vrot.lane.b32.xlu0 %v2058, 32
  %v2061 = vpop.permute.xlu0 %2060
  %v2063 = vadd.f32 %v2053, %v2061
  %v2064 = vtanh.pop %v2063
  %2066 = vrot.lane.b32.xlu0 %v2064, 64
  %v2067 = vpop.permute.xlu0 %2066
  %v2069 = vmul.f32 %v2051, %v2067
  %2071 = vrot.lane.b32.xlu0 %v2069, 32
  %v2072 = vpop.permute.xlu0 %2071
  %v2073 = vsel %vm61, %v2072, 0
  %2075 = vmatprep.subr.mxu0 0.0
  %2076 = vmatpush1.msra.mxu0 %v39
  %2077 = vmatprep.subr.mxu0 0.0
  %2078 = vmatpush1.msra.mxu0 %v40
  %2079 = vmatprep.subr.mxu0 0.0
  %2080 = vmatpush1.msra.mxu0 %v41
  %2081 = vmatprep.subr.mxu0 0.0
  %2082 = vmatpush1.msra.mxu0 %v42
  %2083 = vmatprep.subr.mxu0 0.0
  %2084 = vmatpush1.msra.mxu0 0.0
  %2085 = vmatprep.subr.mxu0 0.0
  %2086 = vmatpush1.msra.mxu0 0.0
  %2087 = vmatprep.subr.mxu0 0.0
  %2088 = vmatpush1.msra.mxu0 0.0
  %2089 = vmatprep.subr.mxu0 0.0
  %2090 = vmatpush1.msra.mxu0 0.0
  %2091 = vmatprep.subr.mxu0 0.0
  %2092 = vmatpush1.msra.mxu0 0.0
  %2093 = vmatprep.subr.mxu0 0.0
  %2094 = vmatpush1.msra.mxu0 0.0
  %2095 = vmatprep.subr.mxu0 0.0
  %2096 = vmatpush1.msra.mxu0 0.0
  %2097 = vmatprep.subr.mxu0 0.0
  %2098 = vmatpush1.msra.mxu0 0.0
  %2099 = vmatprep.subr.mxu0 0.0
  %2100 = vmatpush1.msra.mxu0 0.0
  %2101 = vmatprep.subr.mxu0 0.0
  %2102 = vmatpush1.msra.mxu0 0.0
  %2103 = vmatprep.subr.mxu0 0.0
  %2104 = vmatpush1.msra.mxu0 0.0
  %2105 = vmatprep.subr.mxu0 0.0
  %2106 = vmatpush1.msra.mxu0 0.0
  %2107 = vmatprep.subr.mxu0 0.0
  %2108 = vmatpush1.msra.mxu0 0.0
  %2109 = vmatprep.subr.mxu0 0.0
  %2110 = vmatpush1.msra.mxu0 0.0
  %2111 = vmatprep.subr.mxu0 0.0
  %2112 = vmatpush1.msra.mxu0 0.0
  %2113 = vmatprep.subr.mxu0 0.0
  %2114 = vmatpush1.msra.mxu0 0.0
  %2115 = vmatprep.subr.mxu0 0.0
  %2116 = vmatpush1.msra.mxu0 0.0
  %2117 = vmatprep.subr.mxu0 0.0
  %2118 = vmatpush1.msra.mxu0 0.0
  %2119 = vmatprep.subr.mxu0 0.0
  %2120 = vmatpush1.msra.mxu0 0.0
  %2121 = vmatprep.subr.mxu0 0.0
  %2122 = vmatpush1.msra.mxu0 0.0
  %2123 = vmatprep.subr.mxu0 0.0
  %2124 = vmatpush1.msra.mxu0 0.0
  %2125 = vmatprep.subr.mxu0 0.0
  %2126 = vmatpush1.msra.mxu0 0.0
  %2127 = vmatprep.subr.mxu0 0.0
  %2128 = vmatpush1.msra.mxu0 0.0
  %2129 = vmatprep.subr.mxu0 0.0
  %2130 = vmatpush1.msra.mxu0 0.0
  %2131 = vmatprep.subr.mxu0 0.0
  %2132 = vmatpush1.msra.mxu0 0.0
  %2133 = vmatprep.subr.mxu0 0.0
  %2134 = vmatpush1.msra.mxu0 0.0
  %2135 = vmatprep.subr.mxu0 0.0
  %2136 = vmatpush1.msra.mxu0 0.0
  %2137 = vmatprep.subr.mxu0 0.0
  %2138 = vmatpush1.msra.mxu0 0.0
  %2139 = vmatprep.mubr.f32.mxu0 0.0
  %2140 = vmatmul.mubr.f32.gmra.mrb[0].mxu0 %v2073
  %v2141 = vpop.f32.mrb[0].mxu0
  %v2142 = vadd.f32 0.0, %v2141
  %v2143 = vpop.f32.mrb[0].mxu0
  %2144 = vdwg.mxu0
  %2146 = vrot.lane.b32.xlu0 %v1972, 32
  %v2147 = vpop.permute.xlu0 %2146
  %v2148 = vsel %vm61, %v2147, 0
  %2150 = vmatprep.subr.mxu0 0.0
  %2151 = vmatpush1.msra.mxu0 %v43
  %2152 = vmatprep.subr.mxu0 0.0
  %2153 = vmatpush1.msra.mxu0 %v44
  %2154 = vmatprep.subr.mxu0 0.0
  %2155 = vmatpush1.msra.mxu0 %v45
  %2156 = vmatprep.subr.mxu0 0.0
  %2157 = vmatpush1.msra.mxu0 %v46
  %2158 = vmatprep.subr.mxu0 0.0
  %2159 = vmatpush1.msra.mxu0 0.0
  %2160 = vmatprep.subr.mxu0 0.0
  %2161 = vmatpush1.msra.mxu0 0.0
  %2162 = vmatprep.subr.mxu0 0.0
  %2163 = vmatpush1.msra.mxu0 0.0
  %2164 = vmatprep.subr.mxu0 0.0
  %2165 = vmatpush1.msra.mxu0 0.0
  %2166 = vmatprep.subr.mxu0 0.0
  %2167 = vmatpush1.msra.mxu0 0.0
  %2168 = vmatprep.subr.mxu0 0.0
  %2169 = vmatpush1.msra.mxu0 0.0
  %2170 = vmatprep.subr.mxu0 0.0
  %2171 = vmatpush1.msra.mxu0 0.0
  %2172 = vmatprep.subr.mxu0 0.0
  %2173 = vmatpush1.msra.mxu0 0.0
  %2174 = vmatprep.subr.mxu0 0.0
  %2175 = vmatpush1.msra.mxu0 0.0
  %2176 = vmatprep.subr.mxu0 0.0
  %2177 = vmatpush1.msra.mxu0 0.0
  %2178 = vmatprep.subr.mxu0 0.0
  %2179 = vmatpush1.msra.mxu0 0.0
  %2180 = vmatprep.subr.mxu0 0.0
  %2181 = vmatpush1.msra.mxu0 0.0
  %2182 = vmatprep.subr.mxu0 0.0
  %2183 = vmatpush1.msra.mxu0 0.0
  %2184 = vmatprep.subr.mxu0 0.0
  %2185 = vmatpush1.msra.mxu0 0.0
  %2186 = vmatprep.subr.mxu0 0.0
  %2187 = vmatpush1.msra.mxu0 0.0
  %2188 = vmatprep.subr.mxu0 0.0
  %2189 = vmatpush1.msra.mxu0 0.0
  %2190 = vmatprep.subr.mxu0 0.0
  %2191 = vmatpush1.msra.mxu0 0.0
  %2192 = vmatprep.subr.mxu0 0.0
  %2193 = vmatpush1.msra.mxu0 0.0
  %2194 = vmatprep.subr.mxu0 0.0
  %2195 = vmatpush1.msra.mxu0 0.0
  %2196 = vmatprep.subr.mxu0 0.0
  %2197 = vmatpush1.msra.mxu0 0.0
  %2198 = vmatprep.subr.mxu0 0.0
  %2199 = vmatpush1.msra.mxu0 0.0
  %2200 = vmatprep.subr.mxu0 0.0
  %2201 = vmatpush1.msra.mxu0 0.0
  %2202 = vmatprep.subr.mxu0 0.0
  %2203 = vmatpush1.msra.mxu0 0.0
  %2204 = vmatprep.subr.mxu0 0.0
  %2205 = vmatpush1.msra.mxu0 0.0
  %2206 = vmatprep.subr.mxu0 0.0
  %2207 = vmatpush1.msra.mxu0 0.0
  %2208 = vmatprep.subr.mxu0 0.0
  %2209 = vmatpush1.msra.mxu0 0.0
  %2210 = vmatprep.subr.mxu0 0.0
  %2211 = vmatpush1.msra.mxu0 0.0
  %2212 = vmatprep.subr.mxu0 0.0
  %2213 = vmatpush1.msra.mxu0 0.0
  %2214 = vmatprep.mubr.f32.mxu0 0.0
  %2215 = vmatmul.mubr.f32.gmra.mrb[0].mxu0 %v2148
  %v2216 = vpop.f32.mrb[0].mxu0
  %v2217 = vadd.f32 %v2142, %v2216
  %v2218 = vpop.f32.mrb[0].mxu0
  %2219 = vdwg.mxu0
  %v2220 = vadd.f32 %v2217, %v52
  %v2221 = vxor.u32 %v2220, 2147483648
  %v2222 = vmul.f32 %v2221, 1.442695
  %v2223 = vpow.pop %v2222
  %v2224 = vadd.f32 %v2223, 1.0
  %v2225 = vrcp.pop %v2224
  %v2226 = vmul.f32 1.0, %v2225
  %v2227 = vtanh.pop %v2220
  %v2228 = vmul.f32 %v2226, %v1966
  %2230 = vrot.lane.b32.xlu0 %v2227, 64
  %v2231 = vpop.permute.xlu0 %2230
  %v2233 = vmul.f32 %v2226, %v2231
  %2235 = vrot.lane.b32.xlu0 %v2233, 32
  %v2236 = vpop.permute.xlu0 %2235
  %v2238 = vadd.f32 %v2228, %v2236
  %v2239 = vtanh.pop %v2238
  %2241 = vrot.lane.b32.xlu0 %v2239, 64
  %v2242 = vpop.permute.xlu0 %2241
  %v2244 = vmul.f32 %v2226, %v2242
  %2246 = vst.msk [vmem:[%s10] sm:$0xff] %vm61, %v2072
  %2248 = vrot.lane.b32.xlu0 %v2244, 32
  %v2249 = vpop.permute.xlu0 %2248
  %s2251 = scalar_lea.vmem %s10, 8
  %2252 = vst.msk [vmem:[%s2251] sm:$0xff] %vm61, %v2249
  %2254 = vrot.lane.b32.xlu0 %v2063, 96
  %v2255 = vpop.permute.xlu0 %2254
  %2257 = vst.msk [vmem:[%s11] sm:$0xff] %vm61, %v2255
  %2259 = vrot.lane.b32.xlu0 %v2238, 96
  %v2260 = vpop.permute.xlu0 %2259
  %s2262 = scalar_lea.vmem %s11, 8
  %2263 = vst.msk [vmem:[%s2262] sm:$0xff] %vm61, %v2260
  %v2264 = vld [vmem:[%s5] sm:$0xff]
  %v2265 = vld [vmem:[%s5 + $0x8] sm:$0xff]
  %v2266 = vld [vmem:[%s5 + $0x10] sm:$0xff]
  %v2267 = vld [vmem:[%s5 + $0x18] sm:$0xff]
  %v2268 = vld [vmem:[%s6] sm:$0x1]
  %v2270 = vlaneseq
  %v2271 = vshrl.u32 %v2270, 7
  %v2272 = vsub.s32 0, %v2271
  %v2273 = vrot.slane %v2268, %v2272
  %v2275 = vsel %vm61, %v2249, 0
  %2277 = vmatprep.subr.mxu0 0.0
  %2278 = vmatpush1.msra.mxu0 %v2264
  %2279 = vmatprep.subr.mxu0 0.0
  %2280 = vmatpush1.msra.mxu0 %v2265
  %2281 = vmatprep.subr.mxu0 0.0
  %2282 = vmatpush1.msra.mxu0 %v2266
  %2283 = vmatprep.subr.mxu0 0.0
  %2284 = vmatpush1.msra.mxu0 %v2267
  %2285 = vmatprep.subr.mxu0 0.0
  %2286 = vmatpush1.msra.mxu0 0.0
  %2287 = vmatprep.subr.mxu0 0.0
  %2288 = vmatpush1.msra.mxu0 0.0
  %2289 = vmatprep.subr.mxu0 0.0
  %2290 = vmatpush1.msra.mxu0 0.0
  %2291 = vmatprep.subr.mxu0 0.0
  %2292 = vmatpush1.msra.mxu0 0.0
  %2293 = vmatprep.subr.mxu0 0.0
  %2294 = vmatpush1.msra.mxu0 0.0
  %2295 = vmatprep.subr.mxu0 0.0
  %2296 = vmatpush1.msra.mxu0 0.0
  %2297 = vmatprep.subr.mxu0 0.0
  %2298 = vmatpush1.msra.mxu0 0.0
  %2299 = vmatprep.subr.mxu0 0.0
  %2300 = vmatpush1.msra.mxu0 0.0
  %2301 = vmatprep.subr.mxu0 0.0
  %2302 = vmatpush1.msra.mxu0 0.0
  %2303 = vmatprep.subr.mxu0 0.0
  %2304 = vmatpush1.msra.mxu0 0.0
  %2305 = vmatprep.subr.mxu0 0.0
  %2306 = vmatpush1.msra.mxu0 0.0
  %2307 = vmatprep.subr.mxu0 0.0
  %2308 = vmatpush1.msra.mxu0 0.0
  %2309 = vmatprep.subr.mxu0 0.0
  %2310 = vmatpush1.msra.mxu0 0.0
  %2311 = vmatprep.subr.mxu0 0.0
  %2312 = vmatpush1.msra.mxu0 0.0
  %2313 = vmatprep.subr.mxu0 0.0
  %2314 = vmatpush1.msra.mxu0 0.0
  %2315 = vmatprep.subr.mxu0 0.0
  %2316 = vmatpush1.msra.mxu0 0.0
  %2317 = vmatprep.subr.mxu0 0.0
  %2318 = vmatpush1.msra.mxu0 0.0
  %2319 = vmatprep.subr.mxu0 0.0
  %2320 = vmatpush1.msra.mxu0 0.0
  %2321 = vmatprep.subr.mxu0 0.0
  %2322 = vmatpush1.msra.mxu0 0.0
  %2323 = vmatprep.subr.mxu0 0.0
  %2324 = vmatpush1.msra.mxu0 0.0
  %2325 = vmatprep.subr.mxu0 0.0
  %2326 = vmatpush1.msra.mxu0 0.0
  %2327 = vmatprep.subr.mxu0 0.0
  %2328 = vmatpush1.msra.mxu0 0.0
  %2329 = vmatprep.subr.mxu0 0.0
  %2330 = vmatpush1.msra.mxu0 0.0
  %2331 = vmatprep.subr.mxu0 0.0
  %2332 = vmatpush1.msra.mxu0 0.0
  %2333 = vmatprep.subr.mxu0 0.0
  %2334 = vmatpush1.msra.mxu0 0.0
  %2335 = vmatprep.subr.mxu0 0.0
  %2336 = vmatpush1.msra.mxu0 0.0
  %2337 = vmatprep.subr.mxu0 0.0
  %2338 = vmatpush1.msra.mxu0 0.0
  %2339 = vmatprep.subr.mxu0 0.0
  %2340 = vmatpush1.msra.mxu0 0.0
  %2341 = vmatprep.mubr.f32.mxu0 0.0
  %2342 = vmatmul.mubr.f32.gmra.mrb[0].mxu0 %v2275
  %v2343 = vpop.f32.mrb[0].mxu0
  %v2344 = vadd.f32 %v2273, %v2343
  %v2345 = vpop.f32.mrb[0].mxu0
  %2346 = vdwg.mxu0
  %v2347 = vxor.u32 %v2344, 2147483648
  %v2348 = vmul.f32 %v2347, 1.442695
  %v2349 = vpow.pop %v2348
  %v2350 = vadd.f32 %v2349, 1.0
  %v2351 = vrcp.pop %v2350
  %v2352 = vmul.f32 1.0, %v2351
  %2353 = vst [vmem:[%s9] sm:$0xff] %v2352
  // Predicated region
  $region38: #{sentiment_rnn_forward.1} parent=0 // pred_check
    _
  $region39: #{sentiment_rnn_forward.1} parent=0 // pred_check_branch
    %2355 = sbr.rel (0) target = $region41
  $region40: #{sentiment_rnn_forward.1} parent=0 // pred_region
    _
  $region41: #{sentiment_rnn_forward.1} parent=0 // pred_fallthru
    _
  // Predicated region
  $region42: #{sentiment_rnn_forward.1} parent=0 // pred_check
    _
  $region43: #{sentiment_rnn_forward.1} parent=0 // pred_check_branch
    %2357 = sbr.rel (0) target = $region45
  $region44: #{sentiment_rnn_forward.1} parent=0 // pred_region
    _
  $region45: #{sentiment_rnn_forward.1} parent=0 // pred_fallthru
    _
  // Predicated region
  $region46: #{sentiment_rnn_forward.1} parent=0 // pred_check
    _
  $region47: #{sentiment_rnn_forward.1} parent=0 // pred_check_branch
    %2359 = sbr.rel (0) target = $region49
  $region48: #{sentiment_rnn_forward.1} parent=0 // pred_region
    _
  $region49: #{sentiment_rnn_forward.1} parent=0 // pred_fallthru
    _
  // Predicated region
  $region50: #{sentiment_rnn_forward.1} parent=0 // pred_check
    _
  $region51: #{sentiment_rnn_forward.1} parent=0 // pred_check_branch
    %2361 = sbr.rel (0) target = $region53
  $region52: #{sentiment_rnn_forward.1} parent=0 // pred_region
    _
  $region53: #{sentiment_rnn_forward.1} parent=0 // pred_fallthru
    _
  // Predicated region
  $region54: #{sentiment_rnn_forward.1} parent=0 // pred_check
    _
  $region55: #{sentiment_rnn_forward.1} parent=0 // pred_check_branch
    %2363 = sbr.rel (0) target = $region57
  $region56: #{sentiment_rnn_forward.1} parent=0 // pred_region
    _
  $region57: #{sentiment_rnn_forward.1} parent=0 // pred_fallthru
    _
  // Predicated region
  $region58: #{sentiment_rnn_forward.1} parent=0 // pred_check
    _
  $region59: #{sentiment_rnn_forward.1} parent=0 // pred_check_branch
    %2365 = sbr.rel (0) target = $region61
  $region60: #{sentiment_rnn_forward.1} parent=0 // pred_region
    _
  $region61: #{sentiment_rnn_forward.1} parent=0 // pred_fallthru
    _

</llo_original>
